<compile_context>
chip_gen: v6e
topology: v6e:2x2x1
jax: 0.10.0
libtpu: 0.0.40
codegen_flags: <defaults>
</compile_context>

<pallas_src>
import math
from functools import partial

import jax
import jax.numpy as jnp
from jax import lax
from jax.experimental import pallas as pl
from jax.experimental.pallas import tpu as pltpu


def _mha_kernel(has_mask, causal, shared_qkv, G, Dh, S, scale, compute_dtype, *refs):
    """One (batch b, head-group g) grid step.

    refs layout: [x] or [xq, xk, xv], wq, wk, wv, wo, bo, [mask_bias], out, acc
      activations : (1, S, E)        resident across the head-group axis
      wq/wk/wv    : (1, E, G*Dh)     packed per-group projection columns of W.T
      wo          : (1, G*Dh, E)     packed per-group rows of Wo.T
      bo          : (1, E)           fc_out bias (resident)
      mask_bias   : (1, 1, S, S)     bf16 additive bias (0 keep / -1e9 drop)
      out         : (1, S, E)        output block (resident across the group axis)
      acc         : (S, E) f32       VMEM scratch accumulating fc_out partial sums
    """
    i = 0
    if shared_qkv:
        xq_ref = xk_ref = xv_ref = refs[0]
        i = 1
    else:
        xq_ref, xk_ref, xv_ref = refs[0], refs[1], refs[2]
        i = 3
    wq_ref, wk_ref, wv_ref, wo_ref, bo_ref = refs[i:i + 5]
    i += 5
    mask_ref = None
    if has_mask:
        mask_ref = refs[i]
        i += 1
    o_ref = refs[i]
    acc_ref = refs[i + 1]

    g_blk = pl.program_id(1)

    @pl.when(g_blk == 0)
    def _():
        acc_ref[...] = jnp.zeros_like(acc_ref)

    cd = compute_dtype
    x_q = xq_ref[0].astype(cd)                                       # (S, E)
    x_k = x_q if shared_qkv else xk_ref[0].astype(cd)
    x_v = x_q if shared_qkv else xv_ref[0].astype(cd)

    # Wide per-group projections (N = G*Dh lanes): fills the MXU, f32 accumulate.
    # 1/sqrt(Dh) is folded into q here (S*G*Dh muls) instead of scaling each
    # (S, S) score tile (G*S*S muls).
    q_all = jnp.dot(x_q, wq_ref[0], preferred_element_type=jnp.float32) * scale   # (S, G*Dh)
    # k is produced already transposed: contract Wk^T's E axis against x_k's E
    # axis -> (G*Dh, S), so the score matmul is a plain (S,Dh) @ (Dh,S).
    kT_all = lax.dot_general(wk_ref[0], x_k, (((0,), (1,)), ((), ())),
                             preferred_element_type=jnp.float32)                  # (G*Dh, S)
    v_all = jnp.dot(x_v, wv_ref[0], preferred_element_type=jnp.float32)           # (S, G*Dh)

    # Additive mask bias (f32), built once per grid step.
    bias = None
    if has_mask:
        bias = mask_ref[0, 0].astype(jnp.float32)                    # 0 keep / -1e9 drop
    if causal:
        row = lax.broadcasted_iota(jnp.int32, (S, S), 0)
        col = lax.broadcasted_iota(jnp.int32, (S, S), 1)
        cb = jnp.where(col <= row, 0.0, -1e9).astype(jnp.float32)
        bias = cb if bias is None else bias + cb

    attn_parts = []
    for g in range(G):                                               # static unroll, G small
        lo = g * Dh
        qg = q_all[:, lo:lo + Dh].astype(cd)                         # (S, Dh)
        kgT = kT_all[lo:lo + Dh, :].astype(cd)                       # (Dh, S)
        vg = v_all[:, lo:lo + Dh].astype(cd)                         # (S, Dh)

        s = jnp.dot(qg, kgT, preferred_element_type=jnp.float32)     # (S, S) f32
        if bias is not None:
            s = s + bias

        # Numerically stable softmax in f32; exp + approx reciprocal use the EUP.
        s = s - jnp.max(s, axis=-1, keepdims=True)
        p = jnp.exp(s)
        p = p * pl.reciprocal(jnp.sum(p, axis=-1, keepdims=True), approx=True)

        attn_parts.append(jnp.dot(p.astype(cd), vg,
                                  preferred_element_type=jnp.float32))            # (S, Dh)

    attn_all = (attn_parts[0] if G == 1
                else jnp.concatenate(attn_parts, axis=1)).astype(cd)               # (S, G*Dh)

    # One wide fc_out partial matmul (K = G*Dh) into the f32 accumulator.
    acc_ref[...] += jnp.dot(attn_all, wo_ref[0], preferred_element_type=jnp.float32)

    @pl.when(g_blk == pl.num_programs(1) - 1)
    def _():
        o_ref[0] = (acc_ref[...] + bo_ref[...].astype(jnp.float32)).astype(o_ref.dtype)


def multi_head_attention_forward(values, keys, query, wq, wk, wv, wo, bo,
                                 num_heads, mask=None, causal=False,
                                 compute_dtype=jnp.bfloat16, group_heads=None):
    """values/keys/query: (B, S, E); wq/wk/wv/wo: (E, E) PyTorch (out,in) layout; bo: (E,).

    mask: optional, broadcastable to (B, 1, S, S) — 1 = keep, 0 = masked (masked_fill semantics).
    causal=True applies an in-kernel causal mask (no mask DMA at all).
    """
    B, S, E = query.shape
    H = num_heads
    assert E % H == 0, "embed_size must be divisible by num_heads"
    Dh = E // H

    # Self-attention aliasing: DMA / keep resident only one activation stream.
    shared_qkv = (query is keys) and (query is values)

    # Head-group packing: pick G so the packed lane width G*Dh is ~256 lanes
    # (fills the 256-wide v6e/v7x MXU; >=128 also saturates v5e's MXU).
    if group_heads is None:
        G = max(1, min(H, 256 // Dh)) if Dh < 256 else 1
        while H % G != 0:
            G -= 1
    else:
        G = int(group_heads)
        assert H % G == 0
    HG = H // G

    cd = compute_dtype
    # nn.Linear computes x @ W.T — pre-transpose, pack G heads per block, and
    # store weights in the MXU compute dtype (bf16 halves weight DMA + VMEM).
    wq_p = wq.T.reshape(E, HG, G * Dh).transpose(1, 0, 2).astype(cd)   # (HG, E, G*Dh)
    wk_p = wk.T.reshape(E, HG, G * Dh).transpose(1, 0, 2).astype(cd)
    wv_p = wv.T.reshape(E, HG, G * Dh).transpose(1, 0, 2).astype(cd)
    wo_p = wo.T.reshape(HG, G * Dh, E).astype(cd)                      # (HG, G*Dh, E)
    bo_2d = bo.reshape(1, E).astype(jnp.float32)

    # Arbitrary masks become a bf16 additive bias (half the bytes of an f32 mask,
    # and a single add in-kernel instead of cmp+select over the (S,S) tile).
    has_mask = mask is not None
    if has_mask:
        m = jnp.asarray(mask)
        if m.ndim == 2:
            m = m[None, None]
        elif m.ndim == 3:
            m = m[:, None]
        assert m.ndim == 4 and m.shape[-2:] == (S, S)
        assert m.shape[1] == 1, "per-head masks not supported"  # TODO(synk): per-head masks
        Bm = int(m.shape[0])
        bias_in = jnp.where(m == 0, -1e9, 0.0).astype(jnp.bfloat16)    # (Bm, 1, S, S)

    act_spec = pl.BlockSpec((1, S, E), lambda b, g: (b, 0, 0))         # resident across g

    inputs, in_specs = [], []
    if shared_qkv:
        inputs.append(query)
        in_specs.append(act_spec)
    else:
        inputs.extend([query, keys, values])
        in_specs.extend([act_spec, act_spec, act_spec])

    inputs.extend([wq_p, wk_p, wv_p, wo_p, bo_2d])
    w_spec = pl.BlockSpec((1, E, G * Dh), lambda b, g: (g, 0, 0))
    in_specs.extend([w_spec, w_spec, w_spec,
                     pl.BlockSpec((1, G * Dh, E), lambda b, g: (g, 0, 0)),
                     pl.BlockSpec((1, E), lambda b, g: (0, 0))])

    if has_mask:
        inputs.append(bias_in)
        if Bm > 1:
            in_specs.append(pl.BlockSpec((1, 1, S, S), lambda b, g: (b, 0, 0, 0)))
        else:
            in_specs.append(pl.BlockSpec((1, 1, S, S), lambda b, g: (0, 0, 0, 0)))

    # Size the scoped VMEM limit from the actual per-step working set (default
    # 16/32 MiB limits reject this kernel at production S, E), capped at the
    # physical VMEM of the current chip (64 MiB on v7x, 128 MiB on v5e/v6e).
    act_b = jnp.dtype(query.dtype).itemsize
    cd_b = jnp.dtype(cd).itemsize
    n_act = 1 if shared_qkv else 3
    est = (n_act * 2 * S * E * act_b                       # double-buffered activations
           + 2 * (3 * E * G * Dh + G * Dh * E) * cd_b      # double-buffered weight blocks
           + 2 * S * E * act_b                             # double-buffered output
           + S * E * 4                                     # f32 accumulator scratch
           + (2 * S * S * 2 if has_mask else 0)            # bf16 mask bias blocks
           + 3 * S * G * Dh * 4 + 3 * S * S * 4)           # live f32 intermediates
    try:
        phys_vmem = pltpu.get_tpu_info().vmem_capacity_bytes
    except Exception:
        phys_vmem = 64 * 1024 * 1024
    vmem_limit = int(min(phys_vmem, max(32 * 1024 * 1024, 2 * est)))

    kernel = partial(_mha_kernel, has_mask, causal, shared_qkv, G, Dh, S,
                     1.0 / math.sqrt(Dh), cd)

    return pl.pallas_call(
        kernel,
        out_shape=jax.ShapeDtypeStruct((B, S, E), query.dtype),
        grid_spec=pltpu.PrefetchScalarGridSpec(
            num_scalar_prefetch=0,
            grid=(B, HG),                                   # head-group = reduction axis (last)
            in_specs=in_specs,
            out_specs=pl.BlockSpec((1, S, E), lambda b, g: (b, 0, 0)),
            scratch_shapes=[pltpu.VMEM((S, E), jnp.float32)],
        ),
        compiler_params=pltpu.CompilerParams(
            dimension_semantics=("parallel", "arbitrary"),
            vmem_limit_bytes=vmem_limit,
        ),
    )(*inputs)


def mha_reference(values, keys, query, wq, wk, wv, wo, bo, num_heads, mask=None):
    """Plain-JAX reference matching the PyTorch forward (f32 throughout)."""
    B, S, E = query.shape
    H = num_heads
    Dh = E // H

    def split(x):
        return x.reshape(B, S, H, Dh).transpose(0, 2, 1, 3)

    q = split(query @ wq.T)
    k = split(keys @ wk.T)
    v = split(values @ wv.T)
    s = jnp.einsum('bhqd,bhkd->bhqk', q, k) / math.sqrt(Dh)
    if mask is not None:
        s = jnp.where(jnp.asarray(mask) == 0, -1e9, s)
    p = jax.nn.softmax(s, axis=-1)
    o = jnp.einsum('bhqk,bhkd->bhqd', p, v)
    o = o.transpose(0, 2, 1, 3).reshape(B, S, E)
    return o @ wo.T + bo


if __name__ == "__main__":
    batch, seq, embed_size, num_heads = 2, 8, 32, 4

    key = jax.random.PRNGKey(0)
    ks = jax.random.split(key, 8)
    query = jax.random.normal(ks[0], (batch, seq, embed_size), dtype=jnp.float32)
    keys_in = jax.random.normal(ks[1], (batch, seq, embed_size), dtype=jnp.float32)
    values_in = jax.random.normal(ks[2], (batch, seq, embed_size), dtype=jnp.float32)

    bound = 1.0 / math.sqrt(embed_size)
    wq = jax.random.uniform(ks[3], (embed_size, embed_size), jnp.float32, -bound, bound)
    wk = jax.random.uniform(ks[4], (embed_size, embed_size), jnp.float32, -bound, bound)
    wv = jax.random.uniform(ks[5], (embed_size, embed_size), jnp.float32, -bound, bound)
    wo = jax.random.uniform(ks[6], (embed_size, embed_size), jnp.float32, -bound, bound)
    bo = jax.random.uniform(ks[7], (embed_size,), jnp.float32, -bound, bound)

    ref = mha_reference(values_in, keys_in, query, wq, wk, wv, wo, bo, num_heads)

    # 1) Separate q/k/v, no mask, bf16 MXU operands, all heads packed in one step.
    out = multi_head_attention_forward(values_in, keys_in, query,
                                       wq, wk, wv, wo, bo, num_heads)
    out = jax.block_until_ready(out)
    assert out.shape == (batch, seq, embed_size)
    assert jnp.allclose(out, ref, atol=5e-2, rtol=5e-2), "mismatch (bf16, no mask)"

    # 2) Self-attention aliasing + in-kernel causal mask, 2 heads per grid step.
    x = query
    out_c = multi_head_attention_forward(x, x, x, wq, wk, wv, wo, bo, num_heads,
                                         causal=True, group_heads=2)
    out_c = jax.block_until_ready(out_c)
    causal_mask = jnp.tril(jnp.ones((seq, seq), dtype=jnp.float32))
    ref_c = mha_reference(x, x, x, wq, wk, wv, wo, bo, num_heads, mask=causal_mask)
    assert jnp.allclose(out_c, ref_c, atol=5e-2, rtol=5e-2), "mismatch (causal)"

    # 3) Explicit padding-style mask via bf16 additive bias, one head per step.
    pad_mask = jnp.ones((batch, 1, seq, seq), jnp.float32).at[1, :, :, seq - 2:].set(0.0)
    out_m = multi_head_attention_forward(x, x, x, wq, wk, wv, wo, bo, num_heads,
                                         mask=pad_mask, group_heads=1)
    out_m = jax.block_until_ready(out_m)
    ref_m = mha_reference(x, x, x, wq, wk, wv, wo, bo, num_heads, mask=pad_mask)
    assert jnp.allclose(out_m, ref_m, atol=5e-2, rtol=5e-2), "mismatch (explicit mask)"

    # 4) Exact-semantics check with f32 MXU operands (tight tolerance).
    out_f32 = multi_head_attention_forward(values_in, keys_in, query,
                                           wq, wk, wv, wo, bo, num_heads,
                                           compute_dtype=jnp.float32)
    out_f32 = jax.block_until_ready(out_f32)
    assert jnp.allclose(out_f32, ref, atol=5e-3, rtol=5e-3), "mismatch (f32 exact)"

    print("KERNEL_OK")
</pallas_src>

<mosaic_0001>
module attributes {stable_mosaic.version = 11 : i64} {
  func.func @_mha_kernel(%arg0: i32, %arg1: i32, %arg2: memref<1x8x32xf32, #tpu.memory_space<vmem>>, %arg3: memref<1x8x32xf32, #tpu.memory_space<vmem>>, %arg4: memref<1x8x32xf32, #tpu.memory_space<vmem>>, %arg5: memref<1x32x32xbf16, #tpu.memory_space<vmem>>, %arg6: memref<1x32x32xbf16, #tpu.memory_space<vmem>>, %arg7: memref<1x32x32xbf16, #tpu.memory_space<vmem>>, %arg8: memref<1x32x32xbf16, #tpu.memory_space<vmem>>, %arg9: memref<1x32xf32, #tpu.memory_space<vmem>>, %arg10: memref<1x8x32xf32, #tpu.memory_space<vmem>>, %arg11: memref<8x32xf32, #tpu.memory_space<vmem>>) attributes {dimension_semantics = [#tpu.dimension_semantics<parallel>, #tpu.dimension_semantics<arbitrary>], iteration_bounds = array<i64: 2, 1>, scalar_prefetch = 0 : i64, scratch_operands = 1 : i64, tpu.core_type = #tpu.core_type<tc>, window_params = [{transform_indices = @transform_0, window_bounds = array<i64: 1, 8, 32>}, {transform_indices = @transform_1, window_bounds = array<i64: 1, 8, 32>}, {transform_indices = @transform_2, window_bounds = array<i64: 1, 8, 32>}, {transform_indices = @transform_3, window_bounds = array<i64: 1, 32, 32>}, {transform_indices = @transform_4, window_bounds = array<i64: 1, 32, 32>}, {transform_indices = @transform_5, window_bounds = array<i64: 1, 32, 32>}, {transform_indices = @transform_6, window_bounds = array<i64: 1, 32, 32>}, {pipeline_mode = #tpu.pipeline_mode<synchronous>, transform_indices = @transform_7, window_bounds = array<i64: 1, 32>}, {transform_indices = @transform_8, window_bounds = array<i64: 1, 8, 32>}]} {
    %c0_i32 = arith.constant 0 : i32
    %0 = arith.cmpi eq, %arg1, %c0_i32 : i32
    %1 = arith.extui %0 : i1 to i32
    %c0_i32_0 = arith.constant 0 : i32
    %2 = arith.cmpi ne, %1, %c0_i32_0 : i32
    scf.if %2 {
      %cst_47 = arith.constant 0.000000e+00 : f32
      %110 = vector.broadcast %cst_47 : f32 to vector<8x32xf32>
      %c0_48 = arith.constant 0 : index
      %c0_49 = arith.constant 0 : index
      %111 = vector.load %arg11[%c0_48, %c0_49] : memref<8x32xf32, #tpu.memory_space<vmem>>, vector<8x32xf32>
      tpu.vector_store %arg11[%c0_48, %c0_49], %110 {strides = array<i32>} : memref<8x32xf32, #tpu.memory_space<vmem>>, vector<8x32xf32>,
    } else {
    }
    %c0 = arith.constant 0 : index
    %c0_1 = arith.constant 0 : index
    %c0_2 = arith.constant 0 : index
    %3 = vector.load %arg2[%c0, %c0_1, %c0_2] : memref<1x8x32xf32, #tpu.memory_space<vmem>>, vector<1x8x32xf32>
    %4 = vector.shape_cast %3 : vector<1x8x32xf32> to vector<8x32xf32>
    %5 = arith.truncf %4 : vector<8x32xf32> to vector<8x32xbf16>
    %c0_3 = arith.constant 0 : index
    %c0_4 = arith.constant 0 : index
    %c0_5 = arith.constant 0 : index
    %6 = vector.load %arg3[%c0_3, %c0_4, %c0_5] : memref<1x8x32xf32, #tpu.memory_space<vmem>>, vector<1x8x32xf32>
    %7 = vector.shape_cast %6 : vector<1x8x32xf32> to vector<8x32xf32>
    %8 = arith.truncf %7 : vector<8x32xf32> to vector<8x32xbf16>
    %c0_6 = arith.constant 0 : index
    %c0_7 = arith.constant 0 : index
    %c0_8 = arith.constant 0 : index
    %9 = vector.load %arg4[%c0_6, %c0_7, %c0_8] : memref<1x8x32xf32, #tpu.memory_space<vmem>>, vector<1x8x32xf32>
    %10 = vector.shape_cast %9 : vector<1x8x32xf32> to vector<8x32xf32>
    %11 = arith.truncf %10 : vector<8x32xf32> to vector<8x32xbf16>
    %c0_9 = arith.constant 0 : index
    %c0_10 = arith.constant 0 : index
    %c0_11 = arith.constant 0 : index
    %12 = vector.load %arg5[%c0_9, %c0_10, %c0_11] : memref<1x32x32xbf16, #tpu.memory_space<vmem>>, vector<1x32x32xbf16>
    %13 = vector.shape_cast %12 : vector<1x32x32xbf16> to vector<32x32xbf16>
    %cst = arith.constant dense<0.000000e+00> : vector<8x32xf32>
    %14 = tpu.matmul %5, %13, %cst {dimension_numbers = #tpu.dot_dimension_numbers<[1], [0], [0], [1], [0, 0, 1, 1], [], []>} : vector<8x32xbf16>, vector<32x32xbf16>, vector<8x32xf32> -> vector<8x32xf32>
    %cst_12 = arith.constant 0.353553385 : f32
    %15 = vector.broadcast %cst_12 : f32 to vector<8x32xf32>
    %16 = arith.mulf %14, %15 : vector<8x32xf32>
    %c0_13 = arith.constant 0 : index
    %c0_14 = arith.constant 0 : index
    %c0_15 = arith.constant 0 : index
    %17 = vector.load %arg6[%c0_13, %c0_14, %c0_15] : memref<1x32x32xbf16, #tpu.memory_space<vmem>>, vector<1x32x32xbf16>
    %18 = vector.shape_cast %17 : vector<1x32x32xbf16> to vector<32x32xbf16>
    %cst_16 = arith.constant dense<0.000000e+00> : vector<32x8xf32>
    %19 = tpu.matmul %18, %8, %cst_16 {dimension_numbers = #tpu.dot_dimension_numbers<[0], [1], [1], [0], [0, 1, 1, 0], [], []>} : vector<32x32xbf16>, vector<8x32xbf16>, vector<32x8xf32> -> vector<32x8xf32>
    %c0_17 = arith.constant 0 : index
    %c0_18 = arith.constant 0 : index
    %c0_19 = arith.constant 0 : index
    %20 = vector.load %arg7[%c0_17, %c0_18, %c0_19] : memref<1x32x32xbf16, #tpu.memory_space<vmem>>, vector<1x32x32xbf16>
    %21 = vector.shape_cast %20 : vector<1x32x32xbf16> to vector<32x32xbf16>
    %cst_20 = arith.constant dense<0.000000e+00> : vector<8x32xf32>
    %22 = tpu.matmul %11, %21, %cst_20 {dimension_numbers = #tpu.dot_dimension_numbers<[1], [0], [0], [1], [0, 0, 1, 1], [], []>} : vector<8x32xbf16>, vector<32x32xbf16>, vector<8x32xf32> -> vector<8x32xf32>
    %23 = vector.extract_strided_slice %16 {offsets = [0, 0], sizes = [8, 8], strides = [1, 1]} : vector<8x32xf32> to vector<8x8xf32>
    %24 = arith.truncf %23 : vector<8x8xf32> to vector<8x8xbf16>
    %25 = vector.extract_strided_slice %19 {offsets = [0, 0], sizes = [8, 8], strides = [1, 1]} : vector<32x8xf32> to vector<8x8xf32>
    %26 = arith.truncf %25 : vector<8x8xf32> to vector<8x8xbf16>
    %27 = vector.extract_strided_slice %22 {offsets = [0, 0], sizes = [8, 8], strides = [1, 1]} : vector<8x32xf32> to vector<8x8xf32>
    %28 = arith.truncf %27 : vector<8x8xf32> to vector<8x8xbf16>
    %cst_21 = arith.constant dense<0.000000e+00> : vector<8x8xf32>
    %29 = tpu.matmul %24, %26, %cst_21 {dimension_numbers = #tpu.dot_dimension_numbers<[1], [0], [0], [1], [0, 0, 1, 1], [], []>} : vector<8x8xbf16>, vector<8x8xbf16>, vector<8x8xf32> -> vector<8x8xf32>
    %cst_22 = arith.constant dense<0xFF800000> : vector<8xf32>
    %30 = vector.multi_reduction <maximumf>, %29, %cst_22 [1] : vector<8x8xf32> to vector<8xf32>
    %31 = vector.shape_cast %30 : vector<8xf32> to vector<8x1xf32>
    %32 = vector.broadcast %31 : vector<8x1xf32> to vector<8x8xf32>
    %33 = arith.subf %29, %32 : vector<8x8xf32>
    %34 = math.exp %33 : vector<8x8xf32>
    %cst_23 = arith.constant dense<0.000000e+00> : vector<8xf32>
    %35 = vector.multi_reduction <add>, %34, %cst_23 [1] : vector<8x8xf32> to vector<8xf32>
    %36 = vector.shape_cast %35 : vector<8xf32> to vector<8x1xf32>
    %37 = tpu.reciprocal %36 {approx = true} : vector<8x1xf32> -> vector<8x1xf32>
    %38 = vector.broadcast %37 : vector<8x1xf32> to vector<8x8xf32>
    %39 = arith.mulf %34, %38 : vector<8x8xf32>
    %40 = arith.truncf %39 : vector<8x8xf32> to vector<8x8xbf16>
    %cst_24 = arith.constant dense<0.000000e+00> : vector<8x8xf32>
    %41 = tpu.matmul %40, %28, %cst_24 {dimension_numbers = #tpu.dot_dimension_numbers<[1], [0], [0], [1], [0, 0, 1, 1], [], []>} : vector<8x8xbf16>, vector<8x8xbf16>, vector<8x8xf32> -> vector<8x8xf32>
    %42 = vector.extract_strided_slice %16 {offsets = [0, 8], sizes = [8, 8], strides = [1, 1]} : vector<8x32xf32> to vector<8x8xf32>
    %43 = arith.truncf %42 : vector<8x8xf32> to vector<8x8xbf16>
    %44 = vector.extract_strided_slice %19 {offsets = [8, 0], sizes = [8, 8], strides = [1, 1]} : vector<32x8xf32> to vector<8x8xf32>
    %45 = arith.truncf %44 : vector<8x8xf32> to vector<8x8xbf16>
    %46 = vector.extract_strided_slice %22 {offsets = [0, 8], sizes = [8, 8], strides = [1, 1]} : vector<8x32xf32> to vector<8x8xf32>
    %47 = arith.truncf %46 : vector<8x8xf32> to vector<8x8xbf16>
    %cst_25 = arith.constant dense<0.000000e+00> : vector<8x8xf32>
    %48 = tpu.matmul %43, %45, %cst_25 {dimension_numbers = #tpu.dot_dimension_numbers<[1], [0], [0], [1], [0, 0, 1, 1], [], []>} : vector<8x8xbf16>, vector<8x8xbf16>, vector<8x8xf32> -> vector<8x8xf32>
    %cst_26 = arith.constant dense<0xFF800000> : vector<8xf32>
    %49 = vector.multi_reduction <maximumf>, %48, %cst_26 [1] : vector<8x8xf32> to vector<8xf32>
    %50 = vector.shape_cast %49 : vector<8xf32> to vector<8x1xf32>
    %51 = vector.broadcast %50 : vector<8x1xf32> to vector<8x8xf32>
    %52 = arith.subf %48, %51 : vector<8x8xf32>
    %53 = math.exp %52 : vector<8x8xf32>
    %cst_27 = arith.constant dense<0.000000e+00> : vector<8xf32>
    %54 = vector.multi_reduction <add>, %53, %cst_27 [1] : vector<8x8xf32> to vector<8xf32>
    %55 = vector.shape_cast %54 : vector<8xf32> to vector<8x1xf32>
    %56 = tpu.reciprocal %55 {approx = true} : vector<8x1xf32> -> vector<8x1xf32>
    %57 = vector.broadcast %56 : vector<8x1xf32> to vector<8x8xf32>
    %58 = arith.mulf %53, %57 : vector<8x8xf32>
    %59 = arith.truncf %58 : vector<8x8xf32> to vector<8x8xbf16>
    %cst_28 = arith.constant dense<0.000000e+00> : vector<8x8xf32>
    %60 = tpu.matmul %59, %47, %cst_28 {dimension_numbers = #tpu.dot_dimension_numbers<[1], [0], [0], [1], [0, 0, 1, 1], [], []>} : vector<8x8xbf16>, vector<8x8xbf16>, vector<8x8xf32> -> vector<8x8xf32>
    %61 = vector.extract_strided_slice %16 {offsets = [0, 16], sizes = [8, 8], strides = [1, 1]} : vector<8x32xf32> to vector<8x8xf32>
    %62 = arith.truncf %61 : vector<8x8xf32> to vector<8x8xbf16>
    %63 = vector.extract_strided_slice %19 {offsets = [16, 0], sizes = [8, 8], strides = [1, 1]} : vector<32x8xf32> to vector<8x8xf32>
    %64 = arith.truncf %63 : vector<8x8xf32> to vector<8x8xbf16>
    %65 = vector.extract_strided_slice %22 {offsets = [0, 16], sizes = [8, 8], strides = [1, 1]} : vector<8x32xf32> to vector<8x8xf32>
    %66 = arith.truncf %65 : vector<8x8xf32> to vector<8x8xbf16>
    %cst_29 = arith.constant dense<0.000000e+00> : vector<8x8xf32>
    %67 = tpu.matmul %62, %64, %cst_29 {dimension_numbers = #tpu.dot_dimension_numbers<[1], [0], [0], [1], [0, 0, 1, 1], [], []>} : vector<8x8xbf16>, vector<8x8xbf16>, vector<8x8xf32> -> vector<8x8xf32>
    %cst_30 = arith.constant dense<0xFF800000> : vector<8xf32>
    %68 = vector.multi_reduction <maximumf>, %67, %cst_30 [1] : vector<8x8xf32> to vector<8xf32>
    %69 = vector.shape_cast %68 : vector<8xf32> to vector<8x1xf32>
    %70 = vector.broadcast %69 : vector<8x1xf32> to vector<8x8xf32>
    %71 = arith.subf %67, %70 : vector<8x8xf32>
    %72 = math.exp %71 : vector<8x8xf32>
    %cst_31 = arith.constant dense<0.000000e+00> : vector<8xf32>
    %73 = vector.multi_reduction <add>, %72, %cst_31 [1] : vector<8x8xf32> to vector<8xf32>
    %74 = vector.shape_cast %73 : vector<8xf32> to vector<8x1xf32>
    %75 = tpu.reciprocal %74 {approx = true} : vector<8x1xf32> -> vector<8x1xf32>
    %76 = vector.broadcast %75 : vector<8x1xf32> to vector<8x8xf32>
    %77 = arith.mulf %72, %76 : vector<8x8xf32>
    %78 = arith.truncf %77 : vector<8x8xf32> to vector<8x8xbf16>
    %cst_32 = arith.constant dense<0.000000e+00> : vector<8x8xf32>
    %79 = tpu.matmul %78, %66, %cst_32 {dimension_numbers = #tpu.dot_dimension_numbers<[1], [0], [0], [1], [0, 0, 1, 1], [], []>} : vector<8x8xbf16>, vector<8x8xbf16>, vector<8x8xf32> -> vector<8x8xf32>
    %80 = vector.extract_strided_slice %16 {offsets = [0, 24], sizes = [8, 8], strides = [1, 1]} : vector<8x32xf32> to vector<8x8xf32>
    %81 = arith.truncf %80 : vector<8x8xf32> to vector<8x8xbf16>
    %82 = vector.extract_strided_slice %19 {offsets = [24, 0], sizes = [8, 8], strides = [1, 1]} : vector<32x8xf32> to vector<8x8xf32>
    %83 = arith.truncf %82 : vector<8x8xf32> to vector<8x8xbf16>
    %84 = vector.extract_strided_slice %22 {offsets = [0, 24], sizes = [8, 8], strides = [1, 1]} : vector<8x32xf32> to vector<8x8xf32>
    %85 = arith.truncf %84 : vector<8x8xf32> to vector<8x8xbf16>
    %cst_33 = arith.constant dense<0.000000e+00> : vector<8x8xf32>
    %86 = tpu.matmul %81, %83, %cst_33 {dimension_numbers = #tpu.dot_dimension_numbers<[1], [0], [0], [1], [0, 0, 1, 1], [], []>} : vector<8x8xbf16>, vector<8x8xbf16>, vector<8x8xf32> -> vector<8x8xf32>
    %cst_34 = arith.constant dense<0xFF800000> : vector<8xf32>
    %87 = vector.multi_reduction <maximumf>, %86, %cst_34 [1] : vector<8x8xf32> to vector<8xf32>
    %88 = vector.shape_cast %87 : vector<8xf32> to vector<8x1xf32>
    %89 = vector.broadcast %88 : vector<8x1xf32> to vector<8x8xf32>
    %90 = arith.subf %86, %89 : vector<8x8xf32>
    %91 = math.exp %90 : vector<8x8xf32>
    %cst_35 = arith.constant dense<0.000000e+00> : vector<8xf32>
    %92 = vector.multi_reduction <add>, %91, %cst_35 [1] : vector<8x8xf32> to vector<8xf32>
    %93 = vector.shape_cast %92 : vector<8xf32> to vector<8x1xf32>
    %94 = tpu.reciprocal %93 {approx = true} : vector<8x1xf32> -> vector<8x1xf32>
    %95 = vector.broadcast %94 : vector<8x1xf32> to vector<8x8xf32>
    %96 = arith.mulf %91, %95 : vector<8x8xf32>
    %97 = arith.truncf %96 : vector<8x8xf32> to vector<8x8xbf16>
    %cst_36 = arith.constant dense<0.000000e+00> : vector<8x8xf32>
    %98 = tpu.matmul %97, %85, %cst_36 {dimension_numbers = #tpu.dot_dimension_numbers<[1], [0], [0], [1], [0, 0, 1, 1], [], []>} : vector<8x8xbf16>, vector<8x8xbf16>, vector<8x8xf32> -> vector<8x8xf32>
    %99 = tpu.concatenate %41, %60, %79, %98 in 1 : vector<8x8xf32>, vector<8x8xf32>, vector<8x8xf32>, vector<8x8xf32> -> vector<8x32xf32>
    %100 = arith.truncf %99 : vector<8x32xf32> to vector<8x32xbf16>
    %c0_37 = arith.constant 0 : index
    %c0_38 = arith.constant 0 : index
    %101 = vector.load %arg11[%c0_37, %c0_38] : memref<8x32xf32, #tpu.memory_space<vmem>>, vector<8x32xf32>
    %c0_39 = arith.constant 0 : index
    %c0_40 = arith.constant 0 : index
    %c0_41 = arith.constant 0 : index
    %102 = vector.load %arg8[%c0_39, %c0_40, %c0_41] : memref<1x32x32xbf16, #tpu.memory_space<vmem>>, vector<1x32x32xbf16>
    %103 = vector.shape_cast %102 : vector<1x32x32xbf16> to vector<32x32xbf16>
    %cst_42 = arith.constant dense<0.000000e+00> : vector<8x32xf32>
    %104 = tpu.matmul %100, %103, %cst_42 {dimension_numbers = #tpu.dot_dimension_numbers<[1], [0], [0], [1], [0, 0, 1, 1], [], []>} : vector<8x32xbf16>, vector<32x32xbf16>, vector<8x32xf32> -> vector<8x32xf32>
    %105 = arith.addf %101, %104 : vector<8x32xf32>
    %c0_43 = arith.constant 0 : index
    %c0_44 = arith.constant 0 : index
    %106 = vector.load %arg11[%c0_43, %c0_44] : memref<8x32xf32, #tpu.memory_space<vmem>>, vector<8x32xf32>
    tpu.vector_store %arg11[%c0_43, %c0_44], %105 {strides = array<i32>} : memref<8x32xf32, #tpu.memory_space<vmem>>, vector<8x32xf32>,
    %c0_i32_45 = arith.constant 0 : i32
    %107 = arith.cmpi eq, %arg1, %c0_i32_45 : i32
    %108 = arith.extui %107 : i1 to i32
    %c0_i32_46 = arith.constant 0 : i32
    %109 = arith.cmpi ne, %108, %c0_i32_46 : i32
    scf.if %109 {
      %c0_47 = arith.constant 0 : index
      %c0_48 = arith.constant 0 : index
      %110 = vector.load %arg11[%c0_47, %c0_48] : memref<8x32xf32, #tpu.memory_space<vmem>>, vector<8x32xf32>
      %c0_49 = arith.constant 0 : index
      %c0_50 = arith.constant 0 : index
      %111 = vector.load %arg9[%c0_49, %c0_50] : memref<1x32xf32, #tpu.memory_space<vmem>>, vector<1x32xf32>
      %112 = vector.broadcast %111 : vector<1x32xf32> to vector<8x32xf32>
      %113 = arith.addf %110, %112 : vector<8x32xf32>
      %c0_51 = arith.constant 0 : index
      %c0_52 = arith.constant 0 : index
      %c0_53 = arith.constant 0 : index
      %114 = vector.load %arg10[%c0_51, %c0_52, %c0_53] : memref<1x8x32xf32, #tpu.memory_space<vmem>>, vector<1x8x32xf32>
      %115 = vector.shape_cast %114 : vector<1x8x32xf32> to vector<8x32xf32>
      %116 = vector.shape_cast %113 : vector<8x32xf32> to vector<1x8x32xf32>
      tpu.vector_store %arg10[%c0_51, %c0_52, %c0_53], %116 {strides = array<i32>} : memref<1x8x32xf32, #tpu.memory_space<vmem>>, vector<1x8x32xf32>,
    } else {
    }
    return
  }
  func.func @transform_0(%arg0: i32, %arg1: i32) -> (i32, i32, i32) {
    %c0_i32 = arith.constant 0 : i32
    %c0_i32_0 = arith.constant 0 : i32
    %c0_i32_1 = arith.constant 0 : i32
    return %arg0, %c0_i32, %c0_i32_0 : i32, i32, i32
  }
  func.func @transform_1(%arg0: i32, %arg1: i32) -> (i32, i32, i32) {
    %c0_i32 = arith.constant 0 : i32
    %c0_i32_0 = arith.constant 0 : i32
    %c0_i32_1 = arith.constant 0 : i32
    return %arg0, %c0_i32, %c0_i32_0 : i32, i32, i32
  }
  func.func @transform_2(%arg0: i32, %arg1: i32) -> (i32, i32, i32) {
    %c0_i32 = arith.constant 0 : i32
    %c0_i32_0 = arith.constant 0 : i32
    %c0_i32_1 = arith.constant 0 : i32
    return %arg0, %c0_i32, %c0_i32_0 : i32, i32, i32
  }
  func.func @transform_3(%arg0: i32, %arg1: i32) -> (i32, i32, i32) {
    %c0_i32 = arith.constant 0 : i32
    %c0_i32_0 = arith.constant 0 : i32
    %c0_i32_1 = arith.constant 0 : i32
    return %arg1, %c0_i32, %c0_i32_0 : i32, i32, i32
  }
  func.func @transform_4(%arg0: i32, %arg1: i32) -> (i32, i32, i32) {
    %c0_i32 = arith.constant 0 : i32
    %c0_i32_0 = arith.constant 0 : i32
    %c0_i32_1 = arith.constant 0 : i32
    return %arg1, %c0_i32, %c0_i32_0 : i32, i32, i32
  }
  func.func @transform_5(%arg0: i32, %arg1: i32) -> (i32, i32, i32) {
    %c0_i32 = arith.constant 0 : i32
    %c0_i32_0 = arith.constant 0 : i32
    %c0_i32_1 = arith.constant 0 : i32
    return %arg1, %c0_i32, %c0_i32_0 : i32, i32, i32
  }
  func.func @transform_6(%arg0: i32, %arg1: i32) -> (i32, i32, i32) {
    %c0_i32 = arith.constant 0 : i32
    %c0_i32_0 = arith.constant 0 : i32
    %c0_i32_1 = arith.constant 0 : i32
    return %arg1, %c0_i32, %c0_i32_0 : i32, i32, i32
  }
  func.func @transform_7(%arg0: i32, %arg1: i32) -> (i32, i32) {
    %c0_i32 = arith.constant 0 : i32
    %c0_i32_0 = arith.constant 0 : i32
    %c0_i32_1 = arith.constant 0 : i32
    return %c0_i32, %c0_i32_0 : i32, i32
  }
  func.func @transform_8(%arg0: i32, %arg1: i32) -> (i32, i32, i32) {
    %c0_i32 = arith.constant 0 : i32
    %c0_i32_0 = arith.constant 0 : i32
    %c0_i32_1 = arith.constant 0 : i32
    return %arg0, %c0_i32, %c0_i32_0 : i32, i32, i32
  }
}

</mosaic_0001>

<llo_original>
// kernel: tpu_custom_call.1
$region0: #{tpu_custom_call.1}
  #allocation0 [shape = 'u32[]', space=smem, size = 0x4, offset = 0x4, fixed_abs, tag = 'smem constant byte address 0x4 - core index']
  #allocation1 [shape = 'u32[144,128]{1,0:T(1,128)}', space=vmem, size = 0x12000, scoped, tag = 'internal scratch']
  #allocation2 [shape = 'f32[8,32]{1,0:T(8,128)}', space=vmem, size = 0x1000, scoped, tag = 'scratch operand']
  %s0 = inlined_call_operand.hbm [shape: f32[2,8,32], index: 0, kind: input, shape index: {}]
  %s1 = inlined_call_operand.hbm [shape: f32[2,8,32], index: 1, kind: input, shape index: {}]
  %s2 = inlined_call_operand.hbm [shape: f32[2,8,32], index: 2, kind: input, shape index: {}]
  %s3 = inlined_call_operand.hbm [shape: bf16[1,32,32], index: 3, kind: input, shape index: {}]
  %s4 = inlined_call_operand.hbm [shape: bf16[1,32,32], index: 4, kind: input, shape index: {}]
  %s5 = inlined_call_operand.hbm [shape: bf16[1,32,32], index: 5, kind: input, shape index: {}]
  %s6 = inlined_call_operand.hbm [shape: bf16[1,32,32], index: 6, kind: input, shape index: {}]
  %s7 = inlined_call_operand.vmem [shape: f32[1,32], index: 7, kind: input, shape index: {}]
  %s8 = inlined_call_operand.hbm [shape: f32[2,8,32], index: 8, kind: output, shape index: {}]
  %s9 = sld [smem:[#allocation0]]
  $region101: #{tpu_custom_call.1} parent=0
    _
  %s11 = ssub.s32 1, %s9
  %s12 = scalar_select 0, %s11, %s9
  $region1: #{tpu_custom_call.1} parent=0
    #allocation3 [shape = 'u8[8192]{0}', space=vmem, size = 0x2000, scoped, tag = 'input window, operand 0']
    #allocation4 [shape = 's32[2]{0}', space=sflag, size = 0x8, scoped, tag = 'scoped memory for tpu_custom_call.1']
    #allocation5 [shape = 's32[2]{0}', space=sflag, size = 0x8, scoped, tag = 'scoped memory for tpu_custom_call.1']
    #allocation6 [shape = 'u8[8192]{0}', space=vmem, size = 0x2000, scoped, tag = 'input window, operand 1']
    #allocation7 [shape = 's32[2]{0}', space=sflag, size = 0x8, scoped, tag = 'scoped memory for tpu_custom_call.1']
    #allocation8 [shape = 'u8[8192]{0}', space=vmem, size = 0x2000, scoped, tag = 'input window, operand 2']
    #allocation9 [shape = 'u8[8192]{0}', space=vmem, size = 0x2000, scoped, tag = 'input window, operand 3, single buffered']
    #allocation10 [shape = 's32[1]{0}', space=sflag, size = 0x4, scoped, tag = 'scoped memory for tpu_custom_call.1']
    #allocation11 [shape = 'u8[8192]{0}', space=vmem, size = 0x2000, scoped, tag = 'input window, operand 4, single buffered']
    #allocation12 [shape = 'u8[8192]{0}', space=vmem, size = 0x2000, scoped, tag = 'input window, operand 5, single buffered']
    #allocation13 [shape = 's32[1]{0}', space=sflag, size = 0x4, scoped, tag = 'scoped memory for tpu_custom_call.1']
    #allocation14 [shape = 'u8[8192]{0}', space=vmem, size = 0x2000, scoped, tag = 'input window, operand 6, single buffered']
    #allocation15 [shape = 'u8[8192]{0}', space=vmem, size = 0x2000, scoped, tag = 'output window, operand 0']
    %13 = vsyncpa [#allocation4], 0
    %s14 = scalar_lea.sflag [#allocation4], 1
    %15 = vsyncpa %s14, 0
    %16 = vsyncpa [#allocation7], 0
    %s17 = scalar_lea.sflag [#allocation7], 1
    %18 = vsyncpa %s17, 0
    %19 = vsyncpa [#allocation10], 0
    %20 = vsyncpa [#allocation13], 0
    %21 = vsyncpa [#allocation5], 0
    %s22 = scalar_lea.sflag [#allocation5], 1
    %23 = vsyncpa %s22, 0
    loop: start=0, step=1, limit=4
    $region2: #{tpu_custom_call.1} parent=1 // loop_pre_header
      _
    $region3: #{tpu_custom_call.1} parent=1 // loop_header
      %s25 = sphi 0, %s29
      %p26 = scmp.ge.s32.totalorder %s25, 4
      %s32 = sphi 0, %s44
      %s33 = sphi 0, %s40
      %s34 = sphi 0, %s32
      %s35 = sphi 0, %s33
      %s36 = sphi 0, %s34
      %s37 = sphi 0, %s35
      %s47 = sphi 0, %s49
      %s50 = sphi 0, %s47
      %s51 = sphi 0, %s50
      %s67 = sphi 0, %s51
      %s73 = sphi 0, %s75
      %s76 = sphi 0, %s73
      %s77 = sphi 0, %s76
      %s93 = sphi 0, %s77
      %s99 = sphi 0, %s101
      %s102 = sphi 0, %s99
      %s103 = sphi 0, %s102
      %s119 = sphi 0, %s103
      %s125 = sphi 0, %s127
      %s128 = sphi 0, %s125
      %s129 = sphi 0, %s128
      %s145 = sphi 0, %s129
      %s151 = sphi 0, %s153
      %s154 = sphi 0, %s151
      %s155 = sphi 0, %s154
      %s171 = sphi 0, %s155
      %s177 = sphi 0, %s179
      %s180 = sphi 0, %s177
      %s181 = sphi 0, %s180
      %s197 = sphi 0, %s181
      %s203 = sphi 0, %s205
      %s206 = sphi 0, %s203
      %s207 = sphi 0, %s206
      %s223 = sphi 0, %s207
      %s227 = sphi 0, %s227
      %s229 = sphi 0, %s227
      %s230 = sphi 0, %s229
      %s244 = sphi 0, %s230
      %s250 = sphi 0, %s252
      %s253 = sphi 0, %s250
      %s254 = sphi 0, %s253
      %s270 = sphi 0, %s254
    $region4: #{tpu_custom_call.1} parent=1 // loop_header_branch
      %28 = sbr.rel (%p26) target = $region8
    $region5: #{tpu_custom_call.1} parent=1 // loop_body
      %s30 = ssub.s32 %s25, 1
      %s31 = ssub.s32 %s25, 2
      %s38 = sadd.s32 1, %s33
      %p39 = scmp.ge.s32.totalorder %s38, 1
      %s40 = scalar_select %p39, 0, %s38
      %s41 = sadd.s32 1, %s32
      %s42 = scalar_select %p39, %s41, %s32
      %p43 = scmp.ge.s32.totalorder %s42, 2
      %s44 = scalar_select %p43, 0, %s42
      %s45 = ssub.s32 %s32, %s44
      %p46 = scmp.eq.s32.totalorder %s45, 0
      %s48 = sadd.s32 %s47, 1
      %s49 = scalar_select %p46, %s47, %s48
      %p52 = pneg %p46
      %p53 = scmp.eq.s32.totalorder %s25, 1
      %p54 = por %p52, %p53
      %p55 = scmp.ne.s32.totalorder %s47, %s50
      %p56 = scmp.eq.s32.totalorder %s25, 0
      %p57 = por %p55, %p56
      %p58 = scmp.ne.s32.totalorder %s47, %s50
      %p59 = scmp.eq.s32.totalorder %s30, 1
      %p60 = por %p58, %p59
      %p61 = scmp.ne.s32.totalorder %s50, %s51
      %p62 = scmp.eq.s32.totalorder %s30, 0
      %p63 = por %p61, %p62
      %p64 = scmp.ne.s32.totalorder %s50, %s51
      %p65 = scmp.eq.s32.totalorder %s31, 1
      %p66 = por %p64, %p65
      %p68 = scmp.ne.s32.totalorder %s51, %s67
      %p69 = scmp.eq.s32.totalorder %s31, 0
      %p70 = por %p68, %p69
      %s71 = ssub.s32 %s32, %s44
      %p72 = scmp.eq.s32.totalorder %s71, 0
      %s74 = sadd.s32 %s73, 1
      %s75 = scalar_select %p72, %s73, %s74
      %p78 = pneg %p72
      %p79 = scmp.eq.s32.totalorder %s25, 1
      %p80 = por %p78, %p79
      %p81 = scmp.ne.s32.totalorder %s73, %s76
      %p82 = scmp.eq.s32.totalorder %s25, 0
      %p83 = por %p81, %p82
      %p84 = scmp.ne.s32.totalorder %s73, %s76
      %p85 = scmp.eq.s32.totalorder %s30, 1
      %p86 = por %p84, %p85
      %p87 = scmp.ne.s32.totalorder %s76, %s77
      %p88 = scmp.eq.s32.totalorder %s30, 0
      %p89 = por %p87, %p88
      %p90 = scmp.ne.s32.totalorder %s76, %s77
      %p91 = scmp.eq.s32.totalorder %s31, 1
      %p92 = por %p90, %p91
      %p94 = scmp.ne.s32.totalorder %s77, %s93
      %p95 = scmp.eq.s32.totalorder %s31, 0
      %p96 = por %p94, %p95
      %s97 = ssub.s32 %s32, %s44
      %p98 = scmp.eq.s32.totalorder %s97, 0
      %s100 = sadd.s32 %s99, 1
      %s101 = scalar_select %p98, %s99, %s100
      %p104 = pneg %p98
      %p105 = scmp.eq.s32.totalorder %s25, 1
      %p106 = por %p104, %p105
      %p107 = scmp.ne.s32.totalorder %s99, %s102
      %p108 = scmp.eq.s32.totalorder %s25, 0
      %p109 = por %p107, %p108
      %p110 = scmp.ne.s32.totalorder %s99, %s102
      %p111 = scmp.eq.s32.totalorder %s30, 1
      %p112 = por %p110, %p111
      %p113 = scmp.ne.s32.totalorder %s102, %s103
      %p114 = scmp.eq.s32.totalorder %s30, 0
      %p115 = por %p113, %p114
      %p116 = scmp.ne.s32.totalorder %s102, %s103
      %p117 = scmp.eq.s32.totalorder %s31, 1
      %p118 = por %p116, %p117
      %p120 = scmp.ne.s32.totalorder %s103, %s119
      %p121 = scmp.eq.s32.totalorder %s31, 0
      %p122 = por %p120, %p121
      %s123 = ssub.s32 %s33, %s40
      %p124 = scmp.eq.s32.totalorder %s123, 0
      %s126 = sadd.s32 %s125, 1
      %s127 = scalar_select %p124, %s125, %s126
      %p130 = pneg %p124
      %p131 = scmp.eq.s32.totalorder %s25, 1
      %p132 = por %p130, %p131
      %p133 = scmp.ne.s32.totalorder %s125, %s128
      %p134 = scmp.eq.s32.totalorder %s25, 0
      %p135 = por %p133, %p134
      %p136 = scmp.ne.s32.totalorder %s125, %s128
      %p137 = scmp.eq.s32.totalorder %s30, 1
      %p138 = por %p136, %p137
      %p139 = scmp.ne.s32.totalorder %s128, %s129
      %p140 = scmp.eq.s32.totalorder %s30, 0
      %p141 = por %p139, %p140
      %p142 = scmp.ne.s32.totalorder %s128, %s129
      %p143 = scmp.eq.s32.totalorder %s31, 1
      %p144 = por %p142, %p143
      %p146 = scmp.ne.s32.totalorder %s129, %s145
      %p147 = scmp.eq.s32.totalorder %s31, 0
      %p148 = por %p146, %p147
      %s149 = ssub.s32 %s33, %s40
      %p150 = scmp.eq.s32.totalorder %s149, 0
      %s152 = sadd.s32 %s151, 1
      %s153 = scalar_select %p150, %s151, %s152
      %p156 = pneg %p150
      %p157 = scmp.eq.s32.totalorder %s25, 1
      %p158 = por %p156, %p157
      %p159 = scmp.ne.s32.totalorder %s151, %s154
      %p160 = scmp.eq.s32.totalorder %s25, 0
      %p161 = por %p159, %p160
      %p162 = scmp.ne.s32.totalorder %s151, %s154
      %p163 = scmp.eq.s32.totalorder %s30, 1
      %p164 = por %p162, %p163
      %p165 = scmp.ne.s32.totalorder %s154, %s155
      %p166 = scmp.eq.s32.totalorder %s30, 0
      %p167 = por %p165, %p166
      %p168 = scmp.ne.s32.totalorder %s154, %s155
      %p169 = scmp.eq.s32.totalorder %s31, 1
      %p170 = por %p168, %p169
      %p172 = scmp.ne.s32.totalorder %s155, %s171
      %p173 = scmp.eq.s32.totalorder %s31, 0
      %p174 = por %p172, %p173
      %s175 = ssub.s32 %s33, %s40
      %p176 = scmp.eq.s32.totalorder %s175, 0
      %s178 = sadd.s32 %s177, 1
      %s179 = scalar_select %p176, %s177, %s178
      %p182 = pneg %p176
      %p183 = scmp.eq.s32.totalorder %s25, 1
      %p184 = por %p182, %p183
      %p185 = scmp.ne.s32.totalorder %s177, %s180
      %p186 = scmp.eq.s32.totalorder %s25, 0
      %p187 = por %p185, %p186
      %p188 = scmp.ne.s32.totalorder %s177, %s180
      %p189 = scmp.eq.s32.totalorder %s30, 1
      %p190 = por %p188, %p189
      %p191 = scmp.ne.s32.totalorder %s180, %s181
      %p192 = scmp.eq.s32.totalorder %s30, 0
      %p193 = por %p191, %p192
      %p194 = scmp.ne.s32.totalorder %s180, %s181
      %p195 = scmp.eq.s32.totalorder %s31, 1
      %p196 = por %p194, %p195
      %p198 = scmp.ne.s32.totalorder %s181, %s197
      %p199 = scmp.eq.s32.totalorder %s31, 0
      %p200 = por %p198, %p199
      %s201 = ssub.s32 %s33, %s40
      %p202 = scmp.eq.s32.totalorder %s201, 0
      %s204 = sadd.s32 %s203, 1
      %s205 = scalar_select %p202, %s203, %s204
      %p208 = pneg %p202
      %p209 = scmp.eq.s32.totalorder %s25, 1
      %p210 = por %p208, %p209
      %p211 = scmp.ne.s32.totalorder %s203, %s206
      %p212 = scmp.eq.s32.totalorder %s25, 0
      %p213 = por %p211, %p212
      %p214 = scmp.ne.s32.totalorder %s203, %s206
      %p215 = scmp.eq.s32.totalorder %s30, 1
      %p216 = por %p214, %p215
      %p217 = scmp.ne.s32.totalorder %s206, %s207
      %p218 = scmp.eq.s32.totalorder %s30, 0
      %p219 = por %p217, %p218
      %p220 = scmp.ne.s32.totalorder %s206, %s207
      %p221 = scmp.eq.s32.totalorder %s31, 1
      %p222 = por %p220, %p221
      %p224 = scmp.ne.s32.totalorder %s207, %s223
      %p225 = scmp.eq.s32.totalorder %s31, 0
      %p226 = por %p224, %p225
      %s228 = sadd.s32 %s227, 1
      %p231 = scmp.eq.s32.totalorder %s25, 1
      %p232 = scmp.ne.s32.totalorder %s227, %s229
      %p233 = scmp.eq.s32.totalorder %s25, 0
      %p234 = por %p232, %p233
      %p235 = scmp.ne.s32.totalorder %s227, %s229
      %p236 = scmp.eq.s32.totalorder %s30, 1
      %p237 = por %p235, %p236
      %p238 = scmp.ne.s32.totalorder %s229, %s230
      %p239 = scmp.eq.s32.totalorder %s30, 0
      %p240 = por %p238, %p239
      %p241 = scmp.ne.s32.totalorder %s229, %s230
      %p242 = scmp.eq.s32.totalorder %s31, 1
      %p243 = por %p241, %p242
      %p245 = scmp.ne.s32.totalorder %s230, %s244
      %p246 = scmp.eq.s32.totalorder %s31, 0
      %p247 = por %p245, %p246
      %s248 = ssub.s32 %s32, %s44
      %p249 = scmp.eq.s32.totalorder %s248, 0
      %s251 = sadd.s32 %s250, 1
      %s252 = scalar_select %p249, %s250, %s251
      %p255 = pneg %p249
      %p256 = scmp.eq.s32.totalorder %s25, 1
      %p257 = por %p255, %p256
      %p258 = scmp.ne.s32.totalorder %s250, %s253
      %p259 = scmp.eq.s32.totalorder %s25, 0
      %p260 = por %p258, %p259
      %p261 = scmp.ne.s32.totalorder %s250, %s253
      %p262 = scmp.eq.s32.totalorder %s30, 1
      %p263 = por %p261, %p262
      %p264 = scmp.ne.s32.totalorder %s253, %s254
      %p265 = scmp.eq.s32.totalorder %s30, 0
      %p266 = por %p264, %p265
      %p267 = scmp.ne.s32.totalorder %s253, %s254
      %p268 = scmp.eq.s32.totalorder %s31, 1
      %p269 = por %p267, %p268
      %p271 = scmp.ne.s32.totalorder %s254, %s270
      %p272 = scmp.eq.s32.totalorder %s31, 0
      %p273 = por %p271, %p272
      %p274 = scmp.le.s32.totalorder 1, %s25
      %p275 = scmp.lt.s32.totalorder %s25, 3
      %p276 = pnand %p274, %p275
      %p277 = pneg %p276
      // Predicated region
      $region9: #{tpu_custom_call.1} parent=5 // pred_check
        _
      $region10: #{tpu_custom_call.1} parent=5 // pred_check_branch
        %279 = sbr.rel (%p276) target = $region12
      $region11: #{tpu_custom_call.1} parent=5 // pred_region
        %s280 = ssub.s32 %s25, 1
        // Predicated region
        $region13: #{tpu_custom_call.1} parent=11 // pred_check
          %p281 = pneg %p141
        $region14: #{tpu_custom_call.1} parent=11 // pred_check_branch
          %283 = sbr.rel (%p281) target = $region16
        $region15: #{tpu_custom_call.1} parent=11 // pred_region
          %s285 = ssub.s32 256, 256
          %286 = vsyncadd [#allocation10], %s285
          %s287 = smul.addr %s35, 4
          %s288 = smul.addr %s287, 64
          %s289 = scalar_lea.hbm %s3, %s288
          %s290 = sshll.u32 [#allocation9], 4
          %s291 = int_to_ptr.vmem [resolvable:$true] %s290
          %296 = dma.hbm_to_vmem [thread:$0]  %s289, 256, %s291, [#allocation10], 64, 64, 4
        $region16: #{tpu_custom_call.1} parent=11 // pred_fallthru
          _
        // Predicated region
        $region17: #{tpu_custom_call.1} parent=11 // pred_check
          %p297 = pneg %p167
        $region18: #{tpu_custom_call.1} parent=11 // pred_check_branch
          %299 = sbr.rel (%p297) target = $region20
        $region19: #{tpu_custom_call.1} parent=11 // pred_region
          %s301 = ssub.s32 256, 256
          %302 = vsyncadd [#allocation10], %s301
          %s303 = smul.addr %s35, 4
          %s304 = smul.addr %s303, 64
          %s305 = scalar_lea.hbm %s4, %s304
          %s306 = sshll.u32 [#allocation11], 4
          %s307 = int_to_ptr.vmem [resolvable:$true] %s306
          %312 = dma.hbm_to_vmem [thread:$0]  %s305, 256, %s307, [#allocation10], 64, 64, 4
        $region20: #{tpu_custom_call.1} parent=11 // pred_fallthru
          _
        // Predicated region
        $region21: #{tpu_custom_call.1} parent=11 // pred_check
          %p313 = pneg %p193
        $region22: #{tpu_custom_call.1} parent=11 // pred_check_branch
          %315 = sbr.rel (%p313) target = $region24
        $region23: #{tpu_custom_call.1} parent=11 // pred_region
          %s317 = ssub.s32 256, 256
          %318 = vsyncadd [#allocation13], %s317
          %s319 = smul.addr %s35, 4
          %s320 = smul.addr %s319, 64
          %s321 = scalar_lea.hbm %s5, %s320
          %s322 = sshll.u32 [#allocation12], 4
          %s323 = int_to_ptr.vmem [resolvable:$true] %s322
          %328 = dma.hbm_to_vmem [thread:$0]  %s321, 256, %s323, [#allocation13], 64, 64, 4
        $region24: #{tpu_custom_call.1} parent=11 // pred_fallthru
          _
        // Predicated region
        $region25: #{tpu_custom_call.1} parent=11 // pred_check
          %p329 = pneg %p219
        $region26: #{tpu_custom_call.1} parent=11 // pred_check_branch
          %331 = sbr.rel (%p329) target = $region28
        $region27: #{tpu_custom_call.1} parent=11 // pred_region
          %s333 = ssub.s32 256, 256
          %334 = vsyncadd [#allocation13], %s333
          %s335 = smul.addr %s35, 4
          %s336 = smul.addr %s335, 64
          %s337 = scalar_lea.hbm %s6, %s336
          %s338 = sshll.u32 [#allocation14], 4
          %s339 = int_to_ptr.vmem [resolvable:$true] %s338
          %344 = dma.hbm_to_vmem [thread:$0]  %s337, 256, %s339, [#allocation13], 64, 64, 4
        $region28: #{tpu_custom_call.1} parent=11 // pred_fallthru
          _
        // Predicated region
        $region29: #{tpu_custom_call.1} parent=11 // pred_check
          %p345 = pneg %p240
        $region30: #{tpu_custom_call.1} parent=11 // pred_check_branch
          %347 = sbr.rel (%p345) target = $region32
        $region31: #{tpu_custom_call.1} parent=11 // pred_region
          _
        $region32: #{tpu_custom_call.1} parent=11 // pred_fallthru
          _
      $region12: #{tpu_custom_call.1} parent=5 // pred_fallthru
        _
      %p348 = scmp.lt.s32.totalorder %s25, 2
      // Predicated region
      $region33: #{tpu_custom_call.1} parent=5 // pred_check
        %p349 = pneg %p348
      $region34: #{tpu_custom_call.1} parent=5 // pred_check_branch
        %351 = sbr.rel (%p349) target = $region36
      $region35: #{tpu_custom_call.1} parent=5 // pred_region
        // Predicated region
        $region37: #{tpu_custom_call.1} parent=35 // pred_check
          %p352 = pneg %p57
        $region38: #{tpu_custom_call.1} parent=35 // pred_check_branch
          %354 = sbr.rel (%p352) target = $region40
        $region39: #{tpu_custom_call.1} parent=35 // pred_region
          %s355 = sand.u32 %s47, 1
          %s356 = scalar_lea.sflag [#allocation4], %s355
          %s357 = sand.u32 %s47, 1
          %s358 = smul.addr %s357, 8
          %s359 = scalar_lea.vmem [#allocation3], %s358
          %s361 = ssub.s32 128, 128
          %362 = vsyncadd %s356, %s361
          %s363 = smul.addr %s32, 128
          %s364 = scalar_lea.hbm %s0, %s363
          %s366 = sshll.u32 %s359, 4
          %s367 = int_to_ptr.vmem [resolvable:$true] %s366
          %369 = dma.hbm_to_vmem [thread:$0]  %s364, 128, %s367, %s356
        $region40: #{tpu_custom_call.1} parent=35 // pred_fallthru
          _
        // Predicated region
        $region41: #{tpu_custom_call.1} parent=35 // pred_check
          %p370 = pneg %p83
        $region42: #{tpu_custom_call.1} parent=35 // pred_check_branch
          %372 = sbr.rel (%p370) target = $region44
        $region43: #{tpu_custom_call.1} parent=35 // pred_region
          %s373 = sand.u32 %s25, 1
          %s374 = scalar_lea.sflag [#allocation7], %s373
          %s375 = sand.u32 %s73, 1
          %s376 = smul.addr %s375, 8
          %s377 = scalar_lea.vmem [#allocation6], %s376
          %s379 = ssub.s32 128, 128
          %380 = vsyncadd %s374, %s379
          %s381 = smul.addr %s32, 128
          %s382 = scalar_lea.hbm %s1, %s381
          %s384 = sshll.u32 %s377, 4
          %s385 = int_to_ptr.vmem [resolvable:$true] %s384
          %387 = dma.hbm_to_vmem [thread:$0]  %s382, 128, %s385, %s374
        $region44: #{tpu_custom_call.1} parent=35 // pred_fallthru
          _
        // Predicated region
        $region45: #{tpu_custom_call.1} parent=35 // pred_check
          %p388 = pneg %p109
        $region46: #{tpu_custom_call.1} parent=35 // pred_check_branch
          %390 = sbr.rel (%p388) target = $region48
        $region47: #{tpu_custom_call.1} parent=35 // pred_region
          %s391 = sand.u32 %s25, 1
          %s392 = scalar_lea.sflag [#allocation7], %s391
          %s393 = sand.u32 %s99, 1
          %s394 = smul.addr %s393, 8
          %s395 = scalar_lea.vmem [#allocation8], %s394
          %s397 = ssub.s32 128, 128
          %398 = vsyncadd %s392, %s397
          %s399 = smul.addr %s32, 128
          %s400 = scalar_lea.hbm %s2, %s399
          %s402 = sshll.u32 %s395, 4
          %s403 = int_to_ptr.vmem [resolvable:$true] %s402
          %405 = dma.hbm_to_vmem [thread:$0]  %s400, 128, %s403, %s392
        $region48: #{tpu_custom_call.1} parent=35 // pred_fallthru
          _
      $region36: #{tpu_custom_call.1} parent=5 // pred_fallthru
        _
      %p406 = scmp.le.s32.totalorder 1, %s25
      %p407 = scmp.lt.s32.totalorder %s25, 3
      %p408 = pnand %p406, %p407
      %p409 = pneg %p408
      // Predicated region
      $region49: #{tpu_custom_call.1} parent=5 // pred_check
        _
      $region50: #{tpu_custom_call.1} parent=5 // pred_check_branch
        %411 = sbr.rel (%p408) target = $region52
      $region51: #{tpu_custom_call.1} parent=5 // pred_region
        %s412 = ssub.s32 %s25, 1
        %s413 = sand.u32 %s50, 1
        %s414 = scalar_lea.sflag [#allocation4], %s413
        %s415 = sand.u32 %s50, 1
        %s416 = smul.addr %s415, 8
        %s417 = scalar_lea.vmem [#allocation3], %s416
        // Predicated region
        $region53: #{tpu_custom_call.1} parent=51 // pred_check
          %p418 = pneg %p63
        $region54: #{tpu_custom_call.1} parent=51 // pred_check_branch
          %420 = sbr.rel (%p418) target = $region56
        $region55: #{tpu_custom_call.1} parent=51 // pred_region
          %421 = dma.done %s414, 128
        $region56: #{tpu_custom_call.1} parent=51 // pred_fallthru
          _
        %s422 = sand.u32 %s30, 1
        %s423 = scalar_lea.sflag [#allocation7], %s422
        %s424 = sand.u32 %s76, 1
        %s425 = smul.addr %s424, 8
        %s426 = scalar_lea.vmem [#allocation6], %s425
        // Predicated region
        $region57: #{tpu_custom_call.1} parent=51 // pred_check
          %p427 = pneg %p89
        $region58: #{tpu_custom_call.1} parent=51 // pred_check_branch
          %429 = sbr.rel (%p427) target = $region60
        $region59: #{tpu_custom_call.1} parent=51 // pred_region
          %430 = dma.done %s423, 128
        $region60: #{tpu_custom_call.1} parent=51 // pred_fallthru
          _
        %s431 = sand.u32 %s30, 1
        %s432 = scalar_lea.sflag [#allocation7], %s431
        %s433 = sand.u32 %s102, 1
        %s434 = smul.addr %s433, 8
        %s435 = scalar_lea.vmem [#allocation8], %s434
        // Predicated region
        $region61: #{tpu_custom_call.1} parent=51 // pred_check
          %p436 = pneg %p115
        $region62: #{tpu_custom_call.1} parent=51 // pred_check_branch
          %438 = sbr.rel (%p436) target = $region64
        $region63: #{tpu_custom_call.1} parent=51 // pred_region
          %439 = dma.done %s432, 128
        $region64: #{tpu_custom_call.1} parent=51 // pred_fallthru
          _
        // Predicated region
        $region65: #{tpu_custom_call.1} parent=51 // pred_check
          %p440 = pneg %p141
        $region66: #{tpu_custom_call.1} parent=51 // pred_check_branch
          %442 = sbr.rel (%p440) target = $region68
        $region67: #{tpu_custom_call.1} parent=51 // pred_region
          %443 = dma.done [#allocation10], 256
        $region68: #{tpu_custom_call.1} parent=51 // pred_fallthru
          _
        // Predicated region
        $region69: #{tpu_custom_call.1} parent=51 // pred_check
          %p444 = pneg %p167
        $region70: #{tpu_custom_call.1} parent=51 // pred_check_branch
          %446 = sbr.rel (%p444) target = $region72
        $region71: #{tpu_custom_call.1} parent=51 // pred_region
          %447 = dma.done [#allocation10], 256
        $region72: #{tpu_custom_call.1} parent=51 // pred_fallthru
          _
        // Predicated region
        $region73: #{tpu_custom_call.1} parent=51 // pred_check
          %p448 = pneg %p193
        $region74: #{tpu_custom_call.1} parent=51 // pred_check_branch
          %450 = sbr.rel (%p448) target = $region76
        $region75: #{tpu_custom_call.1} parent=51 // pred_region
          %451 = dma.done [#allocation13], 256
        $region76: #{tpu_custom_call.1} parent=51 // pred_fallthru
          _
        // Predicated region
        $region77: #{tpu_custom_call.1} parent=51 // pred_check
          %p452 = pneg %p219
        $region78: #{tpu_custom_call.1} parent=51 // pred_check_branch
          %454 = sbr.rel (%p452) target = $region80
        $region79: #{tpu_custom_call.1} parent=51 // pred_region
          %455 = dma.done [#allocation13], 256
        $region80: #{tpu_custom_call.1} parent=51 // pred_fallthru
          _
        %s456 = sand.u32 %s50, 1
        %s457 = scalar_lea.sflag [#allocation4], %s456
        %s458 = sand.u32 %s50, 1
        %s459 = smul.addr %s458, 8
        %s460 = scalar_lea.vmem [#allocation3], %s459
        %p461 = pneg %p63
        %p462 = pneg %p60
        %s463 = sand.u32 %s30, 1
        %s464 = scalar_lea.sflag [#allocation7], %s463
        %s465 = sand.u32 %s76, 1
        %s466 = smul.addr %s465, 8
        %s467 = scalar_lea.vmem [#allocation6], %s466
        %p468 = pneg %p89
        %p469 = pneg %p86
        %s470 = sand.u32 %s30, 1
        %s471 = scalar_lea.sflag [#allocation7], %s470
        %s472 = sand.u32 %s102, 1
        %s473 = smul.addr %s472, 8
        %s474 = scalar_lea.vmem [#allocation8], %s473
        %p475 = pneg %p115
        %p476 = pneg %p112
        %p477 = pneg %p141
        %p478 = pneg %p138
        %p479 = pneg %p167
        %p480 = pneg %p164
        %p481 = pneg %p193
        %p482 = pneg %p190
        %p483 = pneg %p219
        %p484 = pneg %p216
        %p485 = pneg %p240
        %p486 = pneg %p237
        %p487 = pneg %p266
        %p488 = pneg %p263
        %s489 = sand.u32 %s253, 1
        %s490 = scalar_lea.sflag [#allocation5], %s489
        %s491 = sand.u32 %s253, 1
        %s492 = smul.addr %s491, 8
        %s493 = scalar_lea.vmem [#allocation15], %s492
        %p495 = scmp.eq.s32.totalorder %s35, 0
        // Predicated region
        $region81: #{tpu_custom_call.1} parent=51 // pred_check
          %p496 = pneg %p495
        $region82: #{tpu_custom_call.1} parent=51 // pred_check_branch
          %498 = sbr.rel (%p496) target = $region84
        $region83: #{tpu_custom_call.1} parent=51 // pred_region
          %vm499 = vcmask 261120
          %500 = vst.msk [vmem:[#allocation2] sm:$0xff] %vm499, 0.0
        $region84: #{tpu_custom_call.1} parent=51 // pred_fallthru
          _
        %v501 = vld [vmem:[%s417] sm:$0xff]
        %v502 = vpack.c.bf16 %v501, %v501
        %v503 = vld [vmem:[%s426] sm:$0xff]
        %v504 = vpack.c.bf16 %v503, %v503
        %v505 = vld [vmem:[%s435] sm:$0xff]
        %v506 = vpack.c.bf16 %v505, %v505
        %v507 = vld [vmem:[#allocation9] sm:$0xf]
        %v508 = vld [vmem:[#allocation9 + $0x4] sm:$0xf]
        %v509 = vld [vmem:[#allocation9 + $0x8] sm:$0xf]
        %v510 = vld [vmem:[#allocation9 + $0xc] sm:$0xf]
        %v515 = vunpack.c.l.b16 %v507
        %v516 = vunpack.c.l.b16 %v508
        %v517 = vunpack.c.l.b16 %v509
        %v518 = vunpack.c.l.b16 %v510
        %v519 = vpack.c.b16 %v516, %v515
        %v520 = vpack.c.b16 %v518, %v517
        %vm523 = vcmask 261120
        %v525 = vsel %vm523, %v502, 0
        %527 = vmatprep.subr.bf16.mxu0 0
        %528 = vmatpush1.bf16.msra.mxu0 0
        %529 = vmatprep.subr.bf16.mxu0 0
        %530 = vmatpush1.bf16.msra.mxu0 0
        %531 = vmatprep.subr.bf16.mxu0 0
        %532 = vmatpush1.bf16.msra.mxu0 0
        %533 = vmatprep.subr.bf16.mxu0 0
        %534 = vmatpush1.bf16.msra.mxu0 0
        %535 = vmatprep.subr.bf16.mxu0 0
        %536 = vmatpush1.bf16.msra.mxu0 0
        %537 = vmatprep.subr.bf16.mxu0 0
        %538 = vmatpush1.bf16.msra.mxu0 0
        %539 = vmatprep.subr.bf16.mxu0 0
        %540 = vmatpush1.bf16.msra.mxu0 %v520
        %541 = vmatprep.subr.bf16.mxu0 0
        %542 = vmatpush1.bf16.msra.mxu0 %v519
        %543 = vmatprep.subr.bf16.mxu0 0
        %544 = vmatpush2.bf16.msra.mxu0 0
        %545 = vmatprep.subr.bf16.mxu0 0
        %546 = vmatpush2.bf16.msra.mxu0 0
        %547 = vmatprep.subr.bf16.mxu0 0
        %548 = vmatpush2.bf16.msra.mxu0 0
        %549 = vmatprep.subr.bf16.mxu0 0
        %550 = vmatpush2.bf16.msra.mxu0 0
        %551 = vmatprep.subr.bf16.mxu0 0
        %552 = vmatpush2.bf16.msra.mxu0 0
        %553 = vmatprep.subr.bf16.mxu0 0
        %554 = vmatpush2.bf16.msra.mxu0 0
        %555 = vmatprep.subr.bf16.mxu0 0
        %556 = vmatpush2.bf16.msra.mxu0 0
        %557 = vmatprep.subr.bf16.mxu0 0
        %558 = vmatpush2.bf16.msra.mxu0 0
        %559 = vmatprep.mubr.bf16.mxu0 0
        %560 = vmatmul.mubr.bf16.gmra.mxu0 %v525
        %v561 = vpop.f32.mrf.mxu0
        %v562 = vadd.f32 0.0, %v561
        %v563 = vpop.f32.mrf.mxu0
        %v564 = vpop.f32.mrf.mxu0
        %v565 = vpop.f32.mrf.mxu0
        %566 = vdwg.mxu0
        %v567 = vmul.f32 %v562, 0.35355338
        %v568 = vld [vmem:[#allocation11] sm:$0xf]
        %v569 = vld [vmem:[#allocation11 + $0x4] sm:$0xf]
        %v570 = vld [vmem:[#allocation11 + $0x8] sm:$0xf]
        %v571 = vld [vmem:[#allocation11 + $0xc] sm:$0xf]
        %v576 = vunpack.c.l.b16 %v568
        %v577 = vunpack.c.l.b16 %v569
        %v578 = vunpack.c.l.b16 %v570
        %v579 = vunpack.c.l.b16 %v571
        %v580 = vpack.c.b16 %v577, %v576
        %v581 = vpack.c.b16 %v579, %v578
        %584 = vxpose.xlu0.c.b16.start [1/8] %v580, 128
        %585 = vxpose.xlu0.c.b16.cont [2/8] %v581, 128
        %586 = vxpose.xlu0.c.b16.cont [3/8] 0, 128
        %587 = vxpose.xlu0.c.b16.cont [4/8] 0, 128
        %588 = vxpose.xlu0.c.b16.cont [5/8] 0, 128
        %589 = vxpose.xlu0.c.b16.cont [6/8] 0, 128
        %590 = vxpose.xlu0.c.b16.cont [7/8] 0, 128
        %591 = vxpose.xlu0.c.b16.end [8/8] 0, 128
        %v592 = vpop.trf.xlu0
        %v593 = vpop.trf.xlu0
        %v594 = vpop.trf.xlu0
        %v595 = vpop.trf.xlu0
        %v596 = vpop.trf.xlu0
        %v597 = vpop.trf.xlu0
        %v598 = vpop.trf.xlu0
        %v599 = vpop.trf.xlu0
        %v601 = vsel %vm523, %v592, 0
        %v604 = vsel %vm523, %v593, 0
        %v607 = vsel %vm523, %v504, 0
        %609 = vmatprep.subr.bf16.mxu0 0
        %610 = vmatpush1.bf16.xpose.msra.mxu0 0
        %611 = vmatprep.subr.bf16.mxu0 0
        %612 = vmatpush1.bf16.xpose.msra.mxu0 0
        %613 = vmatprep.subr.bf16.mxu0 0
        %614 = vmatpush1.bf16.xpose.msra.mxu0 0
        %615 = vmatprep.subr.bf16.mxu0 0
        %616 = vmatpush1.bf16.xpose.msra.mxu0 0
        %617 = vmatprep.subr.bf16.mxu0 0
        %618 = vmatpush1.bf16.xpose.msra.mxu0 0
        %619 = vmatprep.subr.bf16.mxu0 0
        %620 = vmatpush1.bf16.xpose.msra.mxu0 0
        %621 = vmatprep.subr.bf16.mxu0 0
        %622 = vmatpush1.bf16.xpose.msra.mxu0 0
        %623 = vmatprep.subr.bf16.mxu0 0
        %624 = vmatpush1.bf16.xpose.msra.mxu0 %v607
        %625 = vmatprep.subr.bf16.mxu0 0
        %626 = vmatpush2.bf16.xpose.msra.mxu0 0
        %627 = vmatprep.subr.bf16.mxu0 0
        %628 = vmatpush2.bf16.xpose.msra.mxu0 0
        %629 = vmatprep.subr.bf16.mxu0 0
        %630 = vmatpush2.bf16.xpose.msra.mxu0 0
        %631 = vmatprep.subr.bf16.mxu0 0
        %632 = vmatpush2.bf16.xpose.msra.mxu0 0
        %633 = vmatprep.subr.bf16.mxu0 0
        %634 = vmatpush2.bf16.xpose.msra.mxu0 0
        %635 = vmatprep.subr.bf16.mxu0 0
        %636 = vmatpush2.bf16.xpose.msra.mxu0 0
        %637 = vmatprep.subr.bf16.mxu0 0
        %638 = vmatpush2.bf16.xpose.msra.mxu0 0
        %639 = vmatprep.subr.bf16.mxu0 0
        %640 = vmatpush2.bf16.xpose.msra.mxu0 0
        %641 = vmatprep.mubr.bf16.mxu0 0
        %642 = vmatmul.mubr.bf16.gmra.mxu0 %v601
        %v643 = vpop.f32.mrf.mxu0
        %v644 = vadd.f32 0.0, %v643
        %v645 = vpop.f32.mrf.mxu0
        %v646 = vpop.f32.mrf.mxu0
        %v647 = vadd.f32 0.0, %v646
        %v648 = vpop.f32.mrf.mxu0
        %649 = vmatprep.mubr.bf16.mxu0 0
        %650 = vmatmul.mubr.bf16.gmra.mxu0 %v604
        %v651 = vpop.f32.mrf.mxu0
        %v652 = vadd.f32 0.0, %v651
        %v653 = vpop.f32.mrf.mxu0
        %v654 = vpop.f32.mrf.mxu0
        %v655 = vadd.f32 0.0, %v654
        %v656 = vpop.f32.mrf.mxu0
        %657 = vdwg.mxu0
        %v658 = vld [vmem:[#allocation12] sm:$0xf]
        %v659 = vld [vmem:[#allocation12 + $0x4] sm:$0xf]
        %v660 = vld [vmem:[#allocation12 + $0x8] sm:$0xf]
        %v661 = vld [vmem:[#allocation12 + $0xc] sm:$0xf]
        %v666 = vunpack.c.l.b16 %v658
        %v667 = vunpack.c.l.b16 %v659
        %v668 = vunpack.c.l.b16 %v660
        %v669 = vunpack.c.l.b16 %v661
        %v670 = vpack.c.b16 %v667, %v666
        %v671 = vpack.c.b16 %v669, %v668
        %v675 = vsel %vm523, %v506, 0
        %677 = vmatprep.subr.bf16.mxu0 0
        %678 = vmatpush1.bf16.msra.mxu0 0
        %679 = vmatprep.subr.bf16.mxu0 0
        %680 = vmatpush1.bf16.msra.mxu0 0
        %681 = vmatprep.subr.bf16.mxu0 0
        %682 = vmatpush1.bf16.msra.mxu0 0
        %683 = vmatprep.subr.bf16.mxu0 0
        %684 = vmatpush1.bf16.msra.mxu0 0
        %685 = vmatprep.subr.bf16.mxu0 0
        %686 = vmatpush1.bf16.msra.mxu0 0
        %687 = vmatprep.subr.bf16.mxu0 0
        %688 = vmatpush1.bf16.msra.mxu0 0
        %689 = vmatprep.subr.bf16.mxu0 0
        %690 = vmatpush1.bf16.msra.mxu0 %v671
        %691 = vmatprep.subr.bf16.mxu0 0
        %692 = vmatpush1.bf16.msra.mxu0 %v670
        %693 = vmatprep.subr.bf16.mxu0 0
        %694 = vmatpush2.bf16.msra.mxu0 0
        %695 = vmatprep.subr.bf16.mxu0 0
        %696 = vmatpush2.bf16.msra.mxu0 0
        %697 = vmatprep.subr.bf16.mxu0 0
        %698 = vmatpush2.bf16.msra.mxu0 0
        %699 = vmatprep.subr.bf16.mxu0 0
        %700 = vmatpush2.bf16.msra.mxu0 0
        %701 = vmatprep.subr.bf16.mxu0 0
        %702 = vmatpush2.bf16.msra.mxu0 0
        %703 = vmatprep.subr.bf16.mxu0 0
        %704 = vmatpush2.bf16.msra.mxu0 0
        %705 = vmatprep.subr.bf16.mxu0 0
        %706 = vmatpush2.bf16.msra.mxu0 0
        %707 = vmatprep.subr.bf16.mxu0 0
        %708 = vmatpush2.bf16.msra.mxu0 0
        %709 = vmatprep.mubr.bf16.mxu0 0
        %710 = vmatmul.mubr.bf16.gmra.mxu0 %v675
        %v711 = vpop.f32.mrf.mxu0
        %v712 = vadd.f32 0.0, %v711
        %v713 = vpop.f32.mrf.mxu0
        %v714 = vpop.f32.mrf.mxu0
        %v715 = vpop.f32.mrf.mxu0
        %716 = vdwg.mxu0
        %v717 = vpack.c.bf16 %v567, %v567
        %v718 = vpack.c.bf16 %v644, %v644
        %v719 = vpack.c.bf16 %v712, %v712
        %vm720 = vcmask 64512
        %v722 = vsel %vm720, %v717, 0
        %vm724 = vcmask 1043456
        %v726 = vsel %vm724, %v718, 0
        %728 = vmatprep.subr.bf16.mxu0 0
        %729 = vmatpush1.bf16.msra.mxu0 0
        %730 = vmatprep.subr.bf16.mxu0 0
        %731 = vmatpush1.bf16.msra.mxu0 0
        %732 = vmatprep.subr.bf16.mxu0 0
        %733 = vmatpush1.bf16.msra.mxu0 0
        %734 = vmatprep.subr.bf16.mxu0 0
        %735 = vmatpush1.bf16.msra.mxu0 0
        %736 = vmatprep.subr.bf16.mxu0 0
        %737 = vmatpush1.bf16.msra.mxu0 0
        %738 = vmatprep.subr.bf16.mxu0 0
        %739 = vmatpush1.bf16.msra.mxu0 0
        %740 = vmatprep.subr.bf16.mxu0 0
        %741 = vmatpush1.bf16.msra.mxu0 0
        %742 = vmatprep.subr.bf16.mxu0 0
        %743 = vmatpush1.bf16.msra.mxu0 %v726
        %744 = vmatprep.subr.bf16.mxu0 0
        %745 = vmatpush2.bf16.msra.mxu0 0
        %746 = vmatprep.subr.bf16.mxu0 0
        %747 = vmatpush2.bf16.msra.mxu0 0
        %748 = vmatprep.subr.bf16.mxu0 0
        %749 = vmatpush2.bf16.msra.mxu0 0
        %750 = vmatprep.subr.bf16.mxu0 0
        %751 = vmatpush2.bf16.msra.mxu0 0
        %752 = vmatprep.subr.bf16.mxu0 0
        %753 = vmatpush2.bf16.msra.mxu0 0
        %754 = vmatprep.subr.bf16.mxu0 0
        %755 = vmatpush2.bf16.msra.mxu0 0
        %756 = vmatprep.subr.bf16.mxu0 0
        %757 = vmatpush2.bf16.msra.mxu0 0
        %758 = vmatprep.subr.bf16.mxu0 0
        %759 = vmatpush2.bf16.msra.mxu0 0
        %760 = vmatprep.mubr.bf16.mxu0 0
        %761 = vmatmul.mubr.bf16.gmra.mxu0 %v722
        %v762 = vpop.f32.mrf.mxu0
        %v763 = vadd.f32 0.0, %v762
        %v764 = vpop.f32.mrf.mxu0
        %v765 = vpop.f32.mrf.mxu0
        %v766 = vpop.f32.mrf.mxu0
        %767 = vdwg.mxu0
        %v768 = vsel %vm720, %v763, -inf
        %769 = vmax.xlane.f32.xlu0 %v768
        %v770 = vpop.xlane.xlu0 %769
        %v771 = vsub.f32 %v763, %v770
        %v772 = vmul.f32 %v771, 1.442695
        %v773 = vpow.pop %v772
        %v774 = vsel %vm720, %v773, 0.0
        %775 = vadd.xlane.f32.xlu0 %v774
        %v776 = vpop.xlane.xlu0 %775
        %v777 = vrcp.pop %v776
        %v778 = vmul.f32 %v773, %v777
        %v779 = vpack.c.bf16 %v778, %v778
        %v781 = vsel %vm720, %v779, 0
        %v784 = vsel %vm724, %v719, 0
        %786 = vmatprep.subr.bf16.mxu0 0
        %787 = vmatpush1.bf16.msra.mxu0 0
        %788 = vmatprep.subr.bf16.mxu0 0
        %789 = vmatpush1.bf16.msra.mxu0 0
        %790 = vmatprep.subr.bf16.mxu0 0
        %791 = vmatpush1.bf16.msra.mxu0 0
        %792 = vmatprep.subr.bf16.mxu0 0
        %793 = vmatpush1.bf16.msra.mxu0 0
        %794 = vmatprep.subr.bf16.mxu0 0
        %795 = vmatpush1.bf16.msra.mxu0 0
        %796 = vmatprep.subr.bf16.mxu0 0
        %797 = vmatpush1.bf16.msra.mxu0 0
        %798 = vmatprep.subr.bf16.mxu0 0
        %799 = vmatpush1.bf16.msra.mxu0 0
        %800 = vmatprep.subr.bf16.mxu0 0
        %801 = vmatpush1.bf16.msra.mxu0 %v784
        %802 = vmatprep.subr.bf16.mxu0 0
        %803 = vmatpush2.bf16.msra.mxu0 0
        %804 = vmatprep.subr.bf16.mxu0 0
        %805 = vmatpush2.bf16.msra.mxu0 0
        %806 = vmatprep.subr.bf16.mxu0 0
        %807 = vmatpush2.bf16.msra.mxu0 0
        %808 = vmatprep.subr.bf16.mxu0 0
        %809 = vmatpush2.bf16.msra.mxu0 0
        %810 = vmatprep.subr.bf16.mxu0 0
        %811 = vmatpush2.bf16.msra.mxu0 0
        %812 = vmatprep.subr.bf16.mxu0 0
        %813 = vmatpush2.bf16.msra.mxu0 0
        %814 = vmatprep.subr.bf16.mxu0 0
        %815 = vmatpush2.bf16.msra.mxu0 0
        %816 = vmatprep.subr.bf16.mxu0 0
        %817 = vmatpush2.bf16.msra.mxu0 0
        %818 = vmatprep.mubr.bf16.mxu0 0
        %819 = vmatmul.mubr.bf16.gmra.mxu0 %v781
        %v820 = vpop.f32.mrf.mxu0
        %v821 = vadd.f32 0.0, %v820
        %v822 = vpop.f32.mrf.mxu0
        %v823 = vpop.f32.mrf.mxu0
        %v824 = vpop.f32.mrf.mxu0
        %825 = vdwg.mxu0
        %v826 = vpack.c.bf16 %v647, %v647
        %828 = vrot.lane.b32.xlu0 %v717, 120
        %v829 = vpop.permute.xlu0 %828
        %v831 = vsel %vm720, %v829, 0
        %v834 = vsel %vm724, %v826, 0
        %836 = vmatprep.subr.bf16.mxu0 0
        %837 = vmatpush1.bf16.msra.mxu0 0
        %838 = vmatprep.subr.bf16.mxu0 0
        %839 = vmatpush1.bf16.msra.mxu0 0
        %840 = vmatprep.subr.bf16.mxu0 0
        %841 = vmatpush1.bf16.msra.mxu0 0
        %842 = vmatprep.subr.bf16.mxu0 0
        %843 = vmatpush1.bf16.msra.mxu0 0
        %844 = vmatprep.subr.bf16.mxu0 0
        %845 = vmatpush1.bf16.msra.mxu0 0
        %846 = vmatprep.subr.bf16.mxu0 0
        %847 = vmatpush1.bf16.msra.mxu0 0
        %848 = vmatprep.subr.bf16.mxu0 0
        %849 = vmatpush1.bf16.msra.mxu0 0
        %850 = vmatprep.subr.bf16.mxu0 0
        %851 = vmatpush1.bf16.msra.mxu0 %v834
        %852 = vmatprep.subr.bf16.mxu0 0
        %853 = vmatpush2.bf16.msra.mxu0 0
        %854 = vmatprep.subr.bf16.mxu0 0
        %855 = vmatpush2.bf16.msra.mxu0 0
        %856 = vmatprep.subr.bf16.mxu0 0
        %857 = vmatpush2.bf16.msra.mxu0 0
        %858 = vmatprep.subr.bf16.mxu0 0
        %859 = vmatpush2.bf16.msra.mxu0 0
        %860 = vmatprep.subr.bf16.mxu0 0
        %861 = vmatpush2.bf16.msra.mxu0 0
        %862 = vmatprep.subr.bf16.mxu0 0
        %863 = vmatpush2.bf16.msra.mxu0 0
        %864 = vmatprep.subr.bf16.mxu0 0
        %865 = vmatpush2.bf16.msra.mxu0 0
        %866 = vmatprep.subr.bf16.mxu0 0
        %867 = vmatpush2.bf16.msra.mxu0 0
        %868 = vmatprep.mubr.bf16.mxu0 0
        %869 = vmatmul.mubr.bf16.gmra.mxu0 %v831
        %v870 = vpop.f32.mrf.mxu0
        %v871 = vadd.f32 0.0, %v870
        %v872 = vpop.f32.mrf.mxu0
        %v873 = vpop.f32.mrf.mxu0
        %v874 = vpop.f32.mrf.mxu0
        %875 = vdwg.mxu0
        %v876 = vsel %vm720, %v871, -inf
        %877 = vmax.xlane.f32.xlu0 %v876
        %v878 = vpop.xlane.xlu0 %877
        %v879 = vsub.f32 %v871, %v878
        %v880 = vmul.f32 %v879, 1.442695
        %v881 = vpow.pop %v880
        %v882 = vsel %vm720, %v881, 0.0
        %883 = vadd.xlane.f32.xlu0 %v882
        %v884 = vpop.xlane.xlu0 %883
        %v885 = vrcp.pop %v884
        %v886 = vmul.f32 %v881, %v885
        %v887 = vpack.c.bf16 %v886, %v886
        %889 = vrot.lane.b32.xlu0 %v719, 120
        %v890 = vpop.permute.xlu0 %889
        %v892 = vsel %vm720, %v887, 0
        %v895 = vsel %vm724, %v890, 0
        %897 = vmatprep.subr.bf16.mxu0 0
        %898 = vmatpush1.bf16.msra.mxu0 0
        %899 = vmatprep.subr.bf16.mxu0 0
        %900 = vmatpush1.bf16.msra.mxu0 0
        %901 = vmatprep.subr.bf16.mxu0 0
        %902 = vmatpush1.bf16.msra.mxu0 0
        %903 = vmatprep.subr.bf16.mxu0 0
        %904 = vmatpush1.bf16.msra.mxu0 0
        %905 = vmatprep.subr.bf16.mxu0 0
        %906 = vmatpush1.bf16.msra.mxu0 0
        %907 = vmatprep.subr.bf16.mxu0 0
        %908 = vmatpush1.bf16.msra.mxu0 0
        %909 = vmatprep.subr.bf16.mxu0 0
        %910 = vmatpush1.bf16.msra.mxu0 0
        %911 = vmatprep.subr.bf16.mxu0 0
        %912 = vmatpush1.bf16.msra.mxu0 %v895
        %913 = vmatprep.subr.bf16.mxu0 0
        %914 = vmatpush2.bf16.msra.mxu0 0
        %915 = vmatprep.subr.bf16.mxu0 0
        %916 = vmatpush2.bf16.msra.mxu0 0
        %917 = vmatprep.subr.bf16.mxu0 0
        %918 = vmatpush2.bf16.msra.mxu0 0
        %919 = vmatprep.subr.bf16.mxu0 0
        %920 = vmatpush2.bf16.msra.mxu0 0
        %921 = vmatprep.subr.bf16.mxu0 0
        %922 = vmatpush2.bf16.msra.mxu0 0
        %923 = vmatprep.subr.bf16.mxu0 0
        %924 = vmatpush2.bf16.msra.mxu0 0
        %925 = vmatprep.subr.bf16.mxu0 0
        %926 = vmatpush2.bf16.msra.mxu0 0
        %927 = vmatprep.subr.bf16.mxu0 0
        %928 = vmatpush2.bf16.msra.mxu0 0
        %929 = vmatprep.mubr.bf16.mxu0 0
        %930 = vmatmul.mubr.bf16.gmra.mxu0 %v892
        %v931 = vpop.f32.mrf.mxu0
        %v932 = vadd.f32 0.0, %v931
        %v933 = vpop.f32.mrf.mxu0
        %v934 = vpop.f32.mrf.mxu0
        %v935 = vpop.f32.mrf.mxu0
        %936 = vdwg.mxu0
        %v937 = vpack.c.bf16 %v652, %v652
        %938 = vrot.lane.b32.xlu0 %v717, 112
        %v939 = vpop.permute.xlu0 %938
        %v941 = vsel %vm720, %v939, 0
        %v944 = vsel %vm724, %v937, 0
        %946 = vmatprep.subr.bf16.mxu0 0
        %947 = vmatpush1.bf16.msra.mxu0 0
        %948 = vmatprep.subr.bf16.mxu0 0
        %949 = vmatpush1.bf16.msra.mxu0 0
        %950 = vmatprep.subr.bf16.mxu0 0
        %951 = vmatpush1.bf16.msra.mxu0 0
        %952 = vmatprep.subr.bf16.mxu0 0
        %953 = vmatpush1.bf16.msra.mxu0 0
        %954 = vmatprep.subr.bf16.mxu0 0
        %955 = vmatpush1.bf16.msra.mxu0 0
        %956 = vmatprep.subr.bf16.mxu0 0
        %957 = vmatpush1.bf16.msra.mxu0 0
        %958 = vmatprep.subr.bf16.mxu0 0
        %959 = vmatpush1.bf16.msra.mxu0 0
        %960 = vmatprep.subr.bf16.mxu0 0
        %961 = vmatpush1.bf16.msra.mxu0 %v944
        %962 = vmatprep.subr.bf16.mxu0 0
        %963 = vmatpush2.bf16.msra.mxu0 0
        %964 = vmatprep.subr.bf16.mxu0 0
        %965 = vmatpush2.bf16.msra.mxu0 0
        %966 = vmatprep.subr.bf16.mxu0 0
        %967 = vmatpush2.bf16.msra.mxu0 0
        %968 = vmatprep.subr.bf16.mxu0 0
        %969 = vmatpush2.bf16.msra.mxu0 0
        %970 = vmatprep.subr.bf16.mxu0 0
        %971 = vmatpush2.bf16.msra.mxu0 0
        %972 = vmatprep.subr.bf16.mxu0 0
        %973 = vmatpush2.bf16.msra.mxu0 0
        %974 = vmatprep.subr.bf16.mxu0 0
        %975 = vmatpush2.bf16.msra.mxu0 0
        %976 = vmatprep.subr.bf16.mxu0 0
        %977 = vmatpush2.bf16.msra.mxu0 0
        %978 = vmatprep.mubr.bf16.mxu0 0
        %979 = vmatmul.mubr.bf16.gmra.mxu0 %v941
        %v980 = vpop.f32.mrf.mxu0
        %v981 = vadd.f32 0.0, %v980
        %v982 = vpop.f32.mrf.mxu0
        %v983 = vpop.f32.mrf.mxu0
        %v984 = vpop.f32.mrf.mxu0
        %985 = vdwg.mxu0
        %v986 = vsel %vm720, %v981, -inf
        %987 = vmax.xlane.f32.xlu0 %v986
        %v988 = vpop.xlane.xlu0 %987
        %v989 = vsub.f32 %v981, %v988
        %v990 = vmul.f32 %v989, 1.442695
        %v991 = vpow.pop %v990
        %v992 = vsel %vm720, %v991, 0.0
        %993 = vadd.xlane.f32.xlu0 %v992
        %v994 = vpop.xlane.xlu0 %993
        %v995 = vrcp.pop %v994
        %v996 = vmul.f32 %v991, %v995
        %v997 = vpack.c.bf16 %v996, %v996
        %998 = vrot.lane.b32.xlu0 %v719, 112
        %v999 = vpop.permute.xlu0 %998
        %v1001 = vsel %vm720, %v997, 0
        %v1004 = vsel %vm724, %v999, 0
        %1006 = vmatprep.subr.bf16.mxu0 0
        %1007 = vmatpush1.bf16.msra.mxu0 0
        %1008 = vmatprep.subr.bf16.mxu0 0
        %1009 = vmatpush1.bf16.msra.mxu0 0
        %1010 = vmatprep.subr.bf16.mxu0 0
        %1011 = vmatpush1.bf16.msra.mxu0 0
        %1012 = vmatprep.subr.bf16.mxu0 0
        %1013 = vmatpush1.bf16.msra.mxu0 0
        %1014 = vmatprep.subr.bf16.mxu0 0
        %1015 = vmatpush1.bf16.msra.mxu0 0
        %1016 = vmatprep.subr.bf16.mxu0 0
        %1017 = vmatpush1.bf16.msra.mxu0 0
        %1018 = vmatprep.subr.bf16.mxu0 0
        %1019 = vmatpush1.bf16.msra.mxu0 0
        %1020 = vmatprep.subr.bf16.mxu0 0
        %1021 = vmatpush1.bf16.msra.mxu0 %v1004
        %1022 = vmatprep.subr.bf16.mxu0 0
        %1023 = vmatpush2.bf16.msra.mxu0 0
        %1024 = vmatprep.subr.bf16.mxu0 0
        %1025 = vmatpush2.bf16.msra.mxu0 0
        %1026 = vmatprep.subr.bf16.mxu0 0
        %1027 = vmatpush2.bf16.msra.mxu0 0
        %1028 = vmatprep.subr.bf16.mxu0 0
        %1029 = vmatpush2.bf16.msra.mxu0 0
        %1030 = vmatprep.subr.bf16.mxu0 0
        %1031 = vmatpush2.bf16.msra.mxu0 0
        %1032 = vmatprep.subr.bf16.mxu0 0
        %1033 = vmatpush2.bf16.msra.mxu0 0
        %1034 = vmatprep.subr.bf16.mxu0 0
        %1035 = vmatpush2.bf16.msra.mxu0 0
        %1036 = vmatprep.subr.bf16.mxu0 0
        %1037 = vmatpush2.bf16.msra.mxu0 0
        %1038 = vmatprep.mubr.bf16.mxu0 0
        %1039 = vmatmul.mubr.bf16.gmra.mxu0 %v1001
        %v1040 = vpop.f32.mrf.mxu0
        %v1041 = vadd.f32 0.0, %v1040
        %v1042 = vpop.f32.mrf.mxu0
        %v1043 = vpop.f32.mrf.mxu0
        %v1044 = vpop.f32.mrf.mxu0
        %1045 = vdwg.mxu0
        %v1046 = vpack.c.bf16 %v655, %v655
        %1047 = vrot.lane.b32.xlu0 %v717, 104
        %v1048 = vpop.permute.xlu0 %1047
        %v1050 = vsel %vm720, %v1048, 0
        %v1053 = vsel %vm724, %v1046, 0
        %1055 = vmatprep.subr.bf16.mxu0 0
        %1056 = vmatpush1.bf16.msra.mxu0 0
        %1057 = vmatprep.subr.bf16.mxu0 0
        %1058 = vmatpush1.bf16.msra.mxu0 0
        %1059 = vmatprep.subr.bf16.mxu0 0
        %1060 = vmatpush1.bf16.msra.mxu0 0
        %1061 = vmatprep.subr.bf16.mxu0 0
        %1062 = vmatpush1.bf16.msra.mxu0 0
        %1063 = vmatprep.subr.bf16.mxu0 0
        %1064 = vmatpush1.bf16.msra.mxu0 0
        %1065 = vmatprep.subr.bf16.mxu0 0
        %1066 = vmatpush1.bf16.msra.mxu0 0
        %1067 = vmatprep.subr.bf16.mxu0 0
        %1068 = vmatpush1.bf16.msra.mxu0 0
        %1069 = vmatprep.subr.bf16.mxu0 0
        %1070 = vmatpush1.bf16.msra.mxu0 %v1053
        %1071 = vmatprep.subr.bf16.mxu0 0
        %1072 = vmatpush2.bf16.msra.mxu0 0
        %1073 = vmatprep.subr.bf16.mxu0 0
        %1074 = vmatpush2.bf16.msra.mxu0 0
        %1075 = vmatprep.subr.bf16.mxu0 0
        %1076 = vmatpush2.bf16.msra.mxu0 0
        %1077 = vmatprep.subr.bf16.mxu0 0
        %1078 = vmatpush2.bf16.msra.mxu0 0
        %1079 = vmatprep.subr.bf16.mxu0 0
        %1080 = vmatpush2.bf16.msra.mxu0 0
        %1081 = vmatprep.subr.bf16.mxu0 0
        %1082 = vmatpush2.bf16.msra.mxu0 0
        %1083 = vmatprep.subr.bf16.mxu0 0
        %1084 = vmatpush2.bf16.msra.mxu0 0
        %1085 = vmatprep.subr.bf16.mxu0 0
        %1086 = vmatpush2.bf16.msra.mxu0 0
        %1087 = vmatprep.mubr.bf16.mxu0 0
        %1088 = vmatmul.mubr.bf16.gmra.mxu0 %v1050
        %v1089 = vpop.f32.mrf.mxu0
        %v1090 = vadd.f32 0.0, %v1089
        %v1091 = vpop.f32.mrf.mxu0
        %v1092 = vpop.f32.mrf.mxu0
        %v1093 = vpop.f32.mrf.mxu0
        %1094 = vdwg.mxu0
        %v1095 = vsel %vm720, %v1090, -inf
        %1096 = vmax.xlane.f32.xlu0 %v1095
        %v1097 = vpop.xlane.xlu0 %1096
        %v1098 = vsub.f32 %v1090, %v1097
        %v1099 = vmul.f32 %v1098, 1.442695
        %v1100 = vpow.pop %v1099
        %v1101 = vsel %vm720, %v1100, 0.0
        %1102 = vadd.xlane.f32.xlu0 %v1101
        %v1103 = vpop.xlane.xlu0 %1102
        %v1104 = vrcp.pop %v1103
        %v1105 = vmul.f32 %v1100, %v1104
        %v1106 = vpack.c.bf16 %v1105, %v1105
        %1107 = vrot.lane.b32.xlu0 %v719, 104
        %v1108 = vpop.permute.xlu0 %1107
        %v1110 = vsel %vm720, %v1106, 0
        %v1113 = vsel %vm724, %v1108, 0
        %1115 = vmatprep.subr.bf16.mxu0 0
        %1116 = vmatpush1.bf16.msra.mxu0 0
        %1117 = vmatprep.subr.bf16.mxu0 0
        %1118 = vmatpush1.bf16.msra.mxu0 0
        %1119 = vmatprep.subr.bf16.mxu0 0
        %1120 = vmatpush1.bf16.msra.mxu0 0
        %1121 = vmatprep.subr.bf16.mxu0 0
        %1122 = vmatpush1.bf16.msra.mxu0 0
        %1123 = vmatprep.subr.bf16.mxu0 0
        %1124 = vmatpush1.bf16.msra.mxu0 0
        %1125 = vmatprep.subr.bf16.mxu0 0
        %1126 = vmatpush1.bf16.msra.mxu0 0
        %1127 = vmatprep.subr.bf16.mxu0 0
        %1128 = vmatpush1.bf16.msra.mxu0 0
        %1129 = vmatprep.subr.bf16.mxu0 0
        %1130 = vmatpush1.bf16.msra.mxu0 %v1113
        %1131 = vmatprep.subr.bf16.mxu0 0
        %1132 = vmatpush2.bf16.msra.mxu0 0
        %1133 = vmatprep.subr.bf16.mxu0 0
        %1134 = vmatpush2.bf16.msra.mxu0 0
        %1135 = vmatprep.subr.bf16.mxu0 0
        %1136 = vmatpush2.bf16.msra.mxu0 0
        %1137 = vmatprep.subr.bf16.mxu0 0
        %1138 = vmatpush2.bf16.msra.mxu0 0
        %1139 = vmatprep.subr.bf16.mxu0 0
        %1140 = vmatpush2.bf16.msra.mxu0 0
        %1141 = vmatprep.subr.bf16.mxu0 0
        %1142 = vmatpush2.bf16.msra.mxu0 0
        %1143 = vmatprep.subr.bf16.mxu0 0
        %1144 = vmatpush2.bf16.msra.mxu0 0
        %1145 = vmatprep.subr.bf16.mxu0 0
        %1146 = vmatpush2.bf16.msra.mxu0 0
        %1147 = vmatprep.mubr.bf16.mxu0 0
        %1148 = vmatmul.mubr.bf16.gmra.mxu0 %v1110
        %v1149 = vpop.f32.mrf.mxu0
        %v1150 = vadd.f32 0.0, %v1149
        %v1151 = vpop.f32.mrf.mxu0
        %v1152 = vpop.f32.mrf.mxu0
        %v1153 = vpop.f32.mrf.mxu0
        %1154 = vdwg.mxu0
        %1156 = vrot.lane.b32.xlu0 %v932, 8
        %v1157 = vpop.permute.xlu0 %1156
        %1160 = vrot.lane.b32.xlu0 %v1041, 16
        %v1161 = vpop.permute.xlu0 %1160
        %1164 = vrot.lane.b32.xlu0 %v1150, 24
        %v1165 = vpop.permute.xlu0 %1164
        %v1167 = vsel %vm720, %v821, %v1157
        %vm1168 = vcmask 130048
        %v1169 = vsel %vm1168, %v1167, %v1161
        %vm1170 = vcmask 195584
        %v1171 = vsel %vm1170, %v1169, %v1165
        %v1172 = vpack.c.bf16 %v1171, %v1171
        %v1173 = vld [vmem:[#allocation2] sm:$0xff]
        %v1174 = vld [vmem:[#allocation14] sm:$0xf]
        %v1175 = vld [vmem:[#allocation14 + $0x4] sm:$0xf]
        %v1176 = vld [vmem:[#allocation14 + $0x8] sm:$0xf]
        %v1177 = vld [vmem:[#allocation14 + $0xc] sm:$0xf]
        %v1182 = vunpack.c.l.b16 %v1174
        %v1183 = vunpack.c.l.b16 %v1175
        %v1184 = vunpack.c.l.b16 %v1176
        %v1185 = vunpack.c.l.b16 %v1177
        %v1186 = vpack.c.b16 %v1183, %v1182
        %v1187 = vpack.c.b16 %v1185, %v1184
        %v1191 = vsel %vm523, %v1172, 0
        %1193 = vmatprep.subr.bf16.mxu0 0
        %1194 = vmatpush1.bf16.msra.mxu0 0
        %1195 = vmatprep.subr.bf16.mxu0 0
        %1196 = vmatpush1.bf16.msra.mxu0 0
        %1197 = vmatprep.subr.bf16.mxu0 0
        %1198 = vmatpush1.bf16.msra.mxu0 0
        %1199 = vmatprep.subr.bf16.mxu0 0
        %1200 = vmatpush1.bf16.msra.mxu0 0
        %1201 = vmatprep.subr.bf16.mxu0 0
        %1202 = vmatpush1.bf16.msra.mxu0 0
        %1203 = vmatprep.subr.bf16.mxu0 0
        %1204 = vmatpush1.bf16.msra.mxu0 0
        %1205 = vmatprep.subr.bf16.mxu0 0
        %1206 = vmatpush1.bf16.msra.mxu0 %v1187
        %1207 = vmatprep.subr.bf16.mxu0 0
        %1208 = vmatpush1.bf16.msra.mxu0 %v1186
        %1209 = vmatprep.subr.bf16.mxu0 0
        %1210 = vmatpush2.bf16.msra.mxu0 0
        %1211 = vmatprep.subr.bf16.mxu0 0
        %1212 = vmatpush2.bf16.msra.mxu0 0
        %1213 = vmatprep.subr.bf16.mxu0 0
        %1214 = vmatpush2.bf16.msra.mxu0 0
        %1215 = vmatprep.subr.bf16.mxu0 0
        %1216 = vmatpush2.bf16.msra.mxu0 0
        %1217 = vmatprep.subr.bf16.mxu0 0
        %1218 = vmatpush2.bf16.msra.mxu0 0
        %1219 = vmatprep.subr.bf16.mxu0 0
        %1220 = vmatpush2.bf16.msra.mxu0 0
        %1221 = vmatprep.subr.bf16.mxu0 0
        %1222 = vmatpush2.bf16.msra.mxu0 0
        %1223 = vmatprep.subr.bf16.mxu0 0
        %1224 = vmatpush2.bf16.msra.mxu0 0
        %1225 = vmatprep.mubr.bf16.mxu0 0
        %1226 = vmatmul.mubr.bf16.gmra.mxu0 %v1191
        %v1227 = vpop.f32.mrf.mxu0
        %v1228 = vadd.f32 0.0, %v1227
        %v1229 = vpop.f32.mrf.mxu0
        %v1230 = vpop.f32.mrf.mxu0
        %v1231 = vpop.f32.mrf.mxu0
        %1232 = vdwg.mxu0
        %v1233 = vadd.f32 %v1173, %v1228
        %1234 = vst.msk [vmem:[#allocation2] sm:$0xff] %vm523, %v1233
        // Predicated region
        $region85: #{tpu_custom_call.1} parent=51 // pred_check
          %p1235 = pneg %p495
        $region86: #{tpu_custom_call.1} parent=51 // pred_check_branch
          %1237 = sbr.rel (%p1235) target = $region88
        $region87: #{tpu_custom_call.1} parent=51 // pred_region
          %v1238 = vld [vmem:[#allocation2] sm:$0xff]
          %v1239 = vld [vmem:[%s7] sm:$0x1]
          %v1241 = vlaneseq
          %v1242 = vshrl.u32 %v1241, 7
          %v1243 = vsub.s32 0, %v1242
          %v1244 = vrot.slane %v1239, %v1243
          %v1246 = vadd.f32 %v1238, %v1244
          %1247 = vst.msk [vmem:[%s493] sm:$0xff] %vm523, %v1246
        $region88: #{tpu_custom_call.1} parent=51 // pred_fallthru
          _
        %s1248 = sand.u32 %s253, 1
        %s1249 = scalar_lea.sflag [#allocation5], %s1248
        %s1250 = sand.u32 %s253, 1
        %s1251 = smul.addr %s1250, 8
        %s1252 = scalar_lea.vmem [#allocation15], %s1251
        // Predicated region
        $region89: #{tpu_custom_call.1} parent=51 // pred_check
          %p1253 = pneg %p263
        $region90: #{tpu_custom_call.1} parent=51 // pred_check_branch
          %1255 = sbr.rel (%p1253) target = $region92
        $region91: #{tpu_custom_call.1} parent=51 // pred_region
          %s1257 = ssub.s32 128, 128
          %1258 = vsyncadd %s1249, %s1257
          %s1259 = smul.addr %s34, 128
          %s1260 = scalar_lea.hbm %s8, %s1259
          %s1262 = sshll.u32 %s1252, 4
          %s1263 = int_to_ptr.vmem [resolvable:$true] %s1262
          %1265 = dma.vmem_to_hbm [thread:$0]  %s1263, 128, %s1260, %s1249
        $region92: #{tpu_custom_call.1} parent=51 // pred_fallthru
          _
      $region52: #{tpu_custom_call.1} parent=5 // pred_fallthru
        _
      %p1266 = scmp.le.s32.totalorder 2, %s25
      // Predicated region
      $region93: #{tpu_custom_call.1} parent=5 // pred_check
        %p1267 = pneg %p1266
      $region94: #{tpu_custom_call.1} parent=5 // pred_check_branch
        %1269 = sbr.rel (%p1267) target = $region96
      $region95: #{tpu_custom_call.1} parent=5 // pred_region
        %s1270 = ssub.s32 %s25, 2
        // Predicated region
        $region97: #{tpu_custom_call.1} parent=95 // pred_check
          %p1271 = pneg %p269
        $region98: #{tpu_custom_call.1} parent=95 // pred_check_branch
          %1273 = sbr.rel (%p1271) target = $region100
        $region99: #{tpu_custom_call.1} parent=95 // pred_region
          %s1274 = sand.u32 %s254, 1
          %s1275 = scalar_lea.sflag [#allocation5], %s1274
          %s1276 = sand.u32 %s254, 1
          %s1277 = smul.addr %s1276, 8
          %s1278 = scalar_lea.vmem [#allocation15], %s1277
          %1279 = dma.done %s1275, 128
        $region100: #{tpu_custom_call.1} parent=95 // pred_fallthru
          _
      $region96: #{tpu_custom_call.1} parent=5 // pred_fallthru
        _
    $region6: #{tpu_custom_call.1} parent=1 // loop_footer
      %s29 = sadd.s32 1, %s25
    $region7: #{tpu_custom_call.1} parent=1 // loop_footer_branch
      %24 = sbr.rel target = $region3
    $region8: #{tpu_custom_call.1} parent=1 // loop_exit
      _
    %1280 = vsyncpa [#allocation4], 1
    %s1281 = scalar_lea.sflag [#allocation4], 1
    %1282 = vsyncpa %s1281, 1
    %1283 = vsyncpa [#allocation7], 1
    %s1284 = scalar_lea.sflag [#allocation7], 1
    %1285 = vsyncpa %s1284, 1
    %1286 = vsyncpa [#allocation10], 1
    %1287 = vsyncpa [#allocation13], 1
    %1288 = vsyncpa [#allocation5], 1
    %s1289 = scalar_lea.sflag [#allocation5], 1
    %1290 = vsyncpa %s1289, 1

</llo_original>
